<compile_context>
chip_gen: v7x
topology: tpu7x:2x2x1
jax: 0.10.0
libtpu: 0.0.40
codegen_flags: <defaults>
</compile_context>

<pallas_src>
import jax
import jax.numpy as jnp
from jax.experimental import pallas as pl
from jax.experimental.pallas import tpu as pltpu


# ----------------------------------------------------------------------------
# Fused kernel: all conv+BN+ReLU layers + Linear/ReLU/Linear/Sigmoid head.
# One grid step processes TB batch rows end-to-end.
# ----------------------------------------------------------------------------
def ecg_cnn_kernel(x_ref, w0_ref, s0_ref, wl_ref, sl_ref,
                   w1_ref, b1_ref, w2_ref, b2_ref, o_ref):
    C, O, L = w1_ref.shape                          # filters, out_features, seq len
    TB = o_ref.shape[-1]                            # batch rows in this grid step
    N = TB * L                                      # batch concatenated on lanes

    # Hoisted conv padding=1 boundary masks, built once and reused every layer.
    lane = jax.lax.broadcasted_iota(jnp.int32, (1, N), 1)
    row_first = (lane % L) == 0                     # first sample of each batch row
    row_last = (lane % L) == (L - 1)                # last sample of each batch row

    def shifted(v):
        # v: (rows, N) -> (v[l-1], v[l+1]) with zero boundary per batch row.
        # pltpu.roll needs a non-negative shift; N-1 is the roll-by(-1).
        v_prev = jnp.where(row_first, 0.0, pltpu.roll(v, 1, axis=1))
        v_next = jnp.where(row_last, 0.0, pltpu.roll(v, N - 1, axis=1))
        return v_prev, v_next

    # ---- layer 0: C_in = 1 -> outer-product conv on the VPU -----------------
    x = x_ref[0]                                    # (1, N)
    x_prev, x_next = shifted(x)
    w0 = w0_ref[...]                                # (C, 3), BN scale folded in
    h = w0[:, 0:1] * x_prev + w0[:, 1:2] * x + w0[:, 2:3] * x_next   # (C, N)
    h = jnp.maximum(h + s0_ref[...], 0.0)           # folded BN shift + ReLU

    # ---- layers 1..num_layers-1: one (C, 3C) @ (3C, N) MXU dot per layer ----
    for j in range(wl_ref.shape[0]):
        h_prev, h_next = shifted(h)
        taps = jnp.concatenate([h_prev, h, h_next], axis=0)          # (3C, N)
        acc = jnp.dot(wl_ref[j], taps, preferred_element_type=jnp.float32)
        h = jnp.maximum(acc + sl_ref[j], 0.0)                        # (C, N)

    # ---- head: Linear -> (Dropout = id) -> ReLU -> Linear(1) -> Sigmoid -----
    # Un-concatenate the batch rows (lanes -> (TB, L)) and contract L against
    # the lane-dense (C, O, L) weight in one dot_general batched over channels.
    h3 = h.reshape(C, TB, L)                        # (C, TB, L)
    per_c = jax.lax.dot_general(
        w1_ref[...], h3,
        dimension_numbers=(((2,), (2,)), ((0,), (0,))),
        preferred_element_type=jnp.float32)         # (C, O, TB)
    hvec = jnp.maximum(jnp.sum(per_c, axis=0) + b1_ref[...], 0.0)    # (O, TB)
    # Final Linear(out_features, 1): VPU multiply + sublane reduce -> (1, TB).
    logit = jnp.sum(w2_ref[...] * hvec, axis=0, keepdims=True) + b2_ref[...]
    o_ref[0] = jax.nn.sigmoid(logit)                # lane-dense (1, TB) store


def ecg_cnn_forward(x, params, block_batch=None):
    """x: (B, num_data) float32 -> sigmoid probabilities (B,).

    block_batch (TB) = batch rows per grid step.  Default: whole batch
    (grid=(1,)); on v7x use B//2 so both TensorCores get a grid step.
    """
    B, L = x.shape
    C = params["w0"].shape[0]
    O = params["b1"].shape[0]
    n_rest = params["wl"].shape[0]
    TB = B if block_batch is None else max(1, min(block_batch, B))
    G = (B + TB - 1) // TB
    Bp = G * TB
    if Bp != B:
        x = jnp.pad(x, ((0, Bp - B), (0, 0)))
    # (Bp, L) -> (G, 1, TB*L): row-major, so grid step i holds rows
    # [i*TB, (i+1)*TB) concatenated along lanes.  Free reshape in HBM.
    x2 = x.reshape(G, 1, TB * L)

    out = pl.pallas_call(
        ecg_cnn_kernel,
        out_shape=jax.ShapeDtypeStruct((G, 1, TB), jnp.float32),
        grid=(G,),
        in_specs=[
            pl.BlockSpec((1, 1, TB * L), lambda i: (i, 0, 0)),      # x rows
            pl.BlockSpec((C, 3), lambda i: (0, 0)),                 # w0 (BN folded)
            pl.BlockSpec((C, 1), lambda i: (0, 0)),                 # shift0
            pl.BlockSpec((n_rest, C, 3 * C), lambda i: (0, 0, 0)),  # layer weights
            pl.BlockSpec((n_rest, C, 1), lambda i: (0, 0, 0)),      # layer shifts
            pl.BlockSpec((C, O, L), lambda i: (0, 0, 0)),           # w1 lane-dense
            pl.BlockSpec((O, 1), lambda i: (0, 0)),                 # b1
            pl.BlockSpec((O, 1), lambda i: (0, 0)),                 # w2
            pl.BlockSpec((1, 1), lambda i: (0, 0)),                 # b2
        ],
        out_specs=pl.BlockSpec((1, 1, TB), lambda i: (i, 0, 0)),
        compiler_params=pltpu.CompilerParams(dimension_semantics=("parallel",)),
    )(x2, params["w0"], params["s0"], params["wl"], params["sl"],
      params["w1"], params["b1"], params["w2"], params["b2"])
    return out.reshape(-1)[:B]                      # squeeze -> (B,)


# ----------------------------------------------------------------------------
# Parameter init (deterministic, synthetic) with BatchNorm folded into conv.
# ----------------------------------------------------------------------------
def init_params(key, num_data, num_filters, num_layers, kernel_size, out_features):
    assert kernel_size == 3, "kernel implements the module default kernel_size=3"
    assert num_layers >= 2
    eps = 1e-5
    keys = jax.random.split(key, num_layers * 6 + 4)
    w0 = s0 = None
    wl_list, sl_list = [], []
    for layer in range(num_layers):
        k0, k1, k2, k3, k4, k5 = keys[layer * 6: layer * 6 + 6]
        c_in = 1 if layer == 0 else num_filters
        fan_in = c_in * kernel_size
        w = jax.random.normal(k0, (num_filters, c_in, kernel_size), jnp.float32)
        w = w / jnp.sqrt(fan_in)
        b = 0.01 * jax.random.normal(k1, (num_filters,), jnp.float32)
        gamma = 1.0 + 0.05 * jax.random.normal(k2, (num_filters,), jnp.float32)
        beta = 0.05 * jax.random.normal(k3, (num_filters,), jnp.float32)
        run_mean = 0.05 * jax.random.normal(k4, (num_filters,), jnp.float32)
        run_var = 1.0 + 0.1 * jnp.abs(jax.random.normal(k5, (num_filters,), jnp.float32))
        scale = gamma / jnp.sqrt(run_var + eps)
        shift = (scale * (b - run_mean) + beta).reshape(num_filters, 1)
        w_folded = w * scale[:, None, None]                       # BN scale into weights
        if layer == 0:
            w0 = w_folded[:, 0, :]                                # (C, 3)
            s0 = shift
        else:
            # (C_out, C_in, K) -> (C_out, K*C_in): index k*C_in + c_in matches
            # the in-kernel [tap_prev; tap_mid; tap_next] sublane stacking.
            wl_list.append(jnp.transpose(w_folded, (0, 2, 1))
                           .reshape(num_filters, kernel_size * num_filters))
            sl_list.append(shift)
    kw1, kb1, kw2, kb2 = keys[num_layers * 6:]
    F = num_data * num_filters
    # Head Linear weight stored lane-dense as (C, O, L):
    #   w1[c, o, l] == torch_w1[o, c*L + l]   (preserves torch.flatten ordering).
    w1 = jax.random.normal(kw1, (num_filters, out_features, num_data), jnp.float32)
    w1 = w1 / jnp.sqrt(F)
    b1 = 0.01 * jax.random.normal(kb1, (out_features, 1), jnp.float32)
    w2 = jax.random.normal(kw2, (out_features, 1), jnp.float32) / jnp.sqrt(out_features)
    b2 = 0.01 * jax.random.normal(kb2, (1, 1), jnp.float32)
    return {"w0": w0, "s0": s0,
            "wl": jnp.stack(wl_list), "sl": jnp.stack(sl_list),
            "w1": w1, "b1": b1, "w2": w2, "b2": b2}


# ----------------------------------------------------------------------------
# Pure-JAX reference (same folded params, PyTorch semantics) for validation.
# ----------------------------------------------------------------------------
def ecg_cnn_reference(x, params):
    B, L = x.shape
    hp = jnp.pad(x, ((0, 0), (1, 1)))                              # (B, L+2)
    taps = jnp.stack([hp[:, 0:L], hp[:, 1:L + 1], hp[:, 2:L + 2]], axis=1)
    h = jnp.einsum("ck,bkl->bcl", params["w0"], taps) + params["s0"][None]
    h = jnp.maximum(h, 0.0)
    for j in range(params["wl"].shape[0]):
        hp = jnp.pad(h, ((0, 0), (0, 0), (1, 1)))                  # (B, C, L+2)
        taps = jnp.concatenate([hp[:, :, 0:L], hp[:, :, 1:L + 1],
                                hp[:, :, 2:L + 2]], axis=1)        # (B, 3C, L)
        h = jnp.einsum("oc,bcl->bol", params["wl"][j], taps) + params["sl"][j][None]
        h = jnp.maximum(h, 0.0)
    hvec = jnp.einsum("bcl,col->bo", h, params["w1"]) + params["b1"][:, 0][None]
    hvec = jnp.maximum(hvec, 0.0)
    logit = hvec @ params["w2"][:, 0] + params["b2"][0, 0]
    return jax.nn.sigmoid(logit)


if __name__ == "__main__":
    # Small shapes consistent with the module: num_data=128 (seq len),
    # num_filters=8, num_layers=4, kernel_size=3, out_features=16.
    B, num_data, num_filters, num_layers, kernel_size, out_features = 2, 128, 8, 4, 3, 16

    key = jax.random.PRNGKey(0)
    kx, kx2, kp = jax.random.split(key, 3)
    x = jax.random.normal(kx, (B, num_data), dtype=jnp.float32)
    params = init_params(kp, num_data, num_filters, num_layers, kernel_size, out_features)

    # Config 1: whole batch in one grid step (TB=B, grid=(1,)) — v5e/v6e style.
    fwd = jax.jit(ecg_cnn_forward)
    out = fwd(x, params)
    jax.block_until_ready(out)
    assert out.shape == (B,), out.shape
    assert bool(jnp.all((out >= 0.0) & (out <= 1.0)))
    ref = ecg_cnn_reference(x, params)
    assert bool(jnp.allclose(out, ref, atol=1e-4, rtol=1e-4)), (out, ref)

    # Config 2: multi-step grid (TB=2, grid=(2,)) — exercises the per-row
    # padding masks (no roll leakage across batch rows) and the v7x-style
    # two-TensorCore split of the batch.
    B2 = 4
    x_big = jax.random.normal(kx2, (B2, num_data), dtype=jnp.float32)
    fwd2 = jax.jit(lambda a, p: ecg_cnn_forward(a, p, block_batch=2))
    out2 = fwd2(x_big, params)
    jax.block_until_ready(out2)
    assert out2.shape == (B2,), out2.shape
    ref2 = ecg_cnn_reference(x_big, params)
    assert bool(jnp.allclose(out2, ref2, atol=1e-4, rtol=1e-4)), (out2, ref2)

    print("KERNEL_OK")
</pallas_src>

<mosaic_0001>
module attributes {stable_mosaic.version = 11 : i64} {
  func.func @ecg_cnn_kernel(%arg0: i32, %arg1: memref<1x1x256xf32, #tpu.memory_space<vmem>>, %arg2: memref<8x3xf32, #tpu.memory_space<vmem>>, %arg3: memref<8x1xf32, #tpu.memory_space<vmem>>, %arg4: memref<3x8x24xf32, #tpu.memory_space<vmem>>, %arg5: memref<3x8x1xf32, #tpu.memory_space<vmem>>, %arg6: memref<8x16x128xf32, #tpu.memory_space<vmem>>, %arg7: memref<16x1xf32, #tpu.memory_space<vmem>>, %arg8: memref<16x1xf32, #tpu.memory_space<vmem>>, %arg9: memref<1x1xf32, #tpu.memory_space<vmem>>, %arg10: memref<1x1x2xf32, #tpu.memory_space<vmem>>) attributes {dimension_semantics = [#tpu.dimension_semantics<parallel>], iteration_bounds = array<i64: 1>, scalar_prefetch = 0 : i64, scratch_operands = 0 : i64, tpu.core_type = #tpu.core_type<tc>, window_params = [{transform_indices = @transform_0, window_bounds = array<i64: 1, 1, 256>}, {pipeline_mode = #tpu.pipeline_mode<synchronous>, transform_indices = @transform_1, window_bounds = array<i64: 8, 3>}, {pipeline_mode = #tpu.pipeline_mode<synchronous>, transform_indices = @transform_2, window_bounds = array<i64: 8, 1>}, {pipeline_mode = #tpu.pipeline_mode<synchronous>, transform_indices = @transform_3, window_bounds = array<i64: 3, 8, 24>}, {pipeline_mode = #tpu.pipeline_mode<synchronous>, transform_indices = @transform_4, window_bounds = array<i64: 3, 8, 1>}, {pipeline_mode = #tpu.pipeline_mode<synchronous>, transform_indices = @transform_5, window_bounds = array<i64: 8, 16, 128>}, {pipeline_mode = #tpu.pipeline_mode<synchronous>, transform_indices = @transform_6, window_bounds = array<i64: 16, 1>}, {pipeline_mode = #tpu.pipeline_mode<synchronous>, transform_indices = @transform_7, window_bounds = array<i64: 16, 1>}, {pipeline_mode = #tpu.pipeline_mode<synchronous>, transform_indices = @transform_8, window_bounds = array<i64: 1, 1>}, {transform_indices = @transform_9, window_bounds = array<i64: 1, 1, 2>}]} {
    %0 = tpu.iota {dimensions = array<i32: 1>} : vector<1x256xi32>
    %c128_i32 = arith.constant 128 : i32
    %c0_i32 = arith.constant 0 : i32
    %1 = arith.cmpi eq, %c128_i32, %c0_i32 : i32
    %c1_i32 = arith.constant 1 : i32
    %2 = arith.select %1, %c1_i32, %c128_i32 : i32
    %3 = vector.broadcast %2 : i32 to vector<1x256xi32>
    %4 = arith.remsi %0, %3 : vector<1x256xi32>
    %c0_i32_0 = arith.constant 0 : i32
    %5 = vector.broadcast %c0_i32_0 : i32 to vector<1x256xi32>
    %6 = arith.cmpi ne, %4, %5 : vector<1x256xi32>
    %c0_i32_1 = arith.constant 0 : i32
    %7 = vector.broadcast %c0_i32_1 : i32 to vector<1x256xi32>
    %8 = arith.cmpi slt, %4, %7 : vector<1x256xi32>
    %c0_i32_2 = arith.constant 0 : i32
    %9 = arith.cmpi slt, %2, %c0_i32_2 : i32
    %10 = vector.broadcast %9 : i1 to vector<1x256xi1>
    %11 = vector.broadcast %10 : vector<1x256xi1> to vector<1x256xi1>
    %12 = arith.xori %8, %11 : vector<1x256xi1>
    %13 = arith.andi %12, %6 : vector<1x256xi1>
    %14 = vector.broadcast %2 : i32 to vector<1x256xi32>
    %15 = arith.addi %4, %14 : vector<1x256xi32>
    %16 = arith.select %13, %15, %4 : vector<1x256xi1>, vector<1x256xi32>
    %c0_i32_3 = arith.constant 0 : i32
    %17 = vector.broadcast %c0_i32_3 : i32 to vector<1x256xi32>
    %18 = arith.cmpi eq, %16, %17 : vector<1x256xi32>
    %c128_i32_4 = arith.constant 128 : i32
    %c0_i32_5 = arith.constant 0 : i32
    %19 = arith.cmpi eq, %c128_i32_4, %c0_i32_5 : i32
    %c1_i32_6 = arith.constant 1 : i32
    %20 = arith.select %19, %c1_i32_6, %c128_i32_4 : i32
    %21 = vector.broadcast %20 : i32 to vector<1x256xi32>
    %22 = arith.remsi %0, %21 : vector<1x256xi32>
    %c0_i32_7 = arith.constant 0 : i32
    %23 = vector.broadcast %c0_i32_7 : i32 to vector<1x256xi32>
    %24 = arith.cmpi ne, %22, %23 : vector<1x256xi32>
    %c0_i32_8 = arith.constant 0 : i32
    %25 = vector.broadcast %c0_i32_8 : i32 to vector<1x256xi32>
    %26 = arith.cmpi slt, %22, %25 : vector<1x256xi32>
    %c0_i32_9 = arith.constant 0 : i32
    %27 = arith.cmpi slt, %20, %c0_i32_9 : i32
    %28 = vector.broadcast %27 : i1 to vector<1x256xi1>
    %29 = vector.broadcast %28 : vector<1x256xi1> to vector<1x256xi1>
    %30 = arith.xori %26, %29 : vector<1x256xi1>
    %31 = arith.andi %30, %24 : vector<1x256xi1>
    %32 = vector.broadcast %20 : i32 to vector<1x256xi32>
    %33 = arith.addi %22, %32 : vector<1x256xi32>
    %34 = arith.select %31, %33, %22 : vector<1x256xi1>, vector<1x256xi32>
    %c127_i32 = arith.constant 127 : i32
    %35 = vector.broadcast %c127_i32 : i32 to vector<1x256xi32>
    %36 = arith.cmpi eq, %34, %35 : vector<1x256xi32>
    %c0 = arith.constant 0 : index
    %c0_10 = arith.constant 0 : index
    %c0_11 = arith.constant 0 : index
    %37 = vector.load %arg1[%c0, %c0_10, %c0_11] : memref<1x1x256xf32, #tpu.memory_space<vmem>>, vector<1x1x256xf32>
    %38 = vector.shape_cast %37 : vector<1x1x256xf32> to vector<1x256xf32>
    %c1_i32_12 = arith.constant 1 : i32
    %39 = tpu.dynamic_rotate %38 by %c1_i32_12 dim 1 : vector<1x256xf32>, i32 -> vector<1x256xf32>
    %cst = arith.constant 0.000000e+00 : f32
    %40 = vector.broadcast %cst : f32 to vector<1x256xf32>
    %41 = arith.select %18, %40, %39 : vector<1x256xi1>, vector<1x256xf32>
    %c255_i32 = arith.constant 255 : i32
    %42 = tpu.dynamic_rotate %38 by %c255_i32 dim 1 : vector<1x256xf32>, i32 -> vector<1x256xf32>
    %cst_13 = arith.constant 0.000000e+00 : f32
    %43 = vector.broadcast %cst_13 : f32 to vector<1x256xf32>
    %44 = arith.select %36, %43, %42 : vector<1x256xi1>, vector<1x256xf32>
    %c0_14 = arith.constant 0 : index
    %c0_15 = arith.constant 0 : index
    %45 = vector.load %arg2[%c0_14, %c0_15] : memref<8x3xf32, #tpu.memory_space<vmem>>, vector<8x3xf32>
    %46 = vector.extract_strided_slice %45 {offsets = [0, 0], sizes = [8, 1], strides = [1, 1]} : vector<8x3xf32> to vector<8x1xf32>
    %47 = vector.broadcast %46 : vector<8x1xf32> to vector<8x256xf32>
    %48 = vector.broadcast %41 : vector<1x256xf32> to vector<8x256xf32>
    %49 = arith.mulf %47, %48 : vector<8x256xf32>
    %50 = vector.extract_strided_slice %45 {offsets = [0, 1], sizes = [8, 1], strides = [1, 1]} : vector<8x3xf32> to vector<8x1xf32>
    %51 = vector.broadcast %50 : vector<8x1xf32> to vector<8x256xf32>
    %52 = vector.broadcast %38 : vector<1x256xf32> to vector<8x256xf32>
    %53 = arith.mulf %51, %52 : vector<8x256xf32>
    %54 = arith.addf %49, %53 : vector<8x256xf32>
    %55 = vector.extract_strided_slice %45 {offsets = [0, 2], sizes = [8, 1], strides = [1, 1]} : vector<8x3xf32> to vector<8x1xf32>
    %56 = vector.broadcast %55 : vector<8x1xf32> to vector<8x256xf32>
    %57 = vector.broadcast %44 : vector<1x256xf32> to vector<8x256xf32>
    %58 = arith.mulf %56, %57 : vector<8x256xf32>
    %59 = arith.addf %54, %58 : vector<8x256xf32>
    %c0_16 = arith.constant 0 : index
    %c0_17 = arith.constant 0 : index
    %60 = vector.load %arg3[%c0_16, %c0_17] : memref<8x1xf32, #tpu.memory_space<vmem>>, vector<8x1xf32>
    %61 = vector.broadcast %60 : vector<8x1xf32> to vector<8x256xf32>
    %62 = arith.addf %59, %61 : vector<8x256xf32>
    %cst_18 = arith.constant 0.000000e+00 : f32
    %63 = vector.broadcast %cst_18 : f32 to vector<8x256xf32>
    %64 = arith.maximumf %62, %63 : vector<8x256xf32>
    %c1_i32_19 = arith.constant 1 : i32
    %65 = tpu.dynamic_rotate %64 by %c1_i32_19 dim 1 : vector<8x256xf32>, i32 -> vector<8x256xf32>
    %cst_20 = arith.constant 0.000000e+00 : f32
    %66 = vector.shape_cast %18 : vector<1x256xi1> to vector<1x256xi1>
    %67 = vector.broadcast %66 : vector<1x256xi1> to vector<8x256xi1>
    %68 = vector.broadcast %cst_20 : f32 to vector<8x256xf32>
    %69 = arith.select %67, %68, %65 : vector<8x256xi1>, vector<8x256xf32>
    %c255_i32_21 = arith.constant 255 : i32
    %70 = tpu.dynamic_rotate %64 by %c255_i32_21 dim 1 : vector<8x256xf32>, i32 -> vector<8x256xf32>
    %cst_22 = arith.constant 0.000000e+00 : f32
    %71 = vector.shape_cast %36 : vector<1x256xi1> to vector<1x256xi1>
    %72 = vector.broadcast %71 : vector<1x256xi1> to vector<8x256xi1>
    %73 = vector.broadcast %cst_22 : f32 to vector<8x256xf32>
    %74 = arith.select %72, %73, %70 : vector<8x256xi1>, vector<8x256xf32>
    %75 = tpu.concatenate %69, %64, %74 in 0 : vector<8x256xf32>, vector<8x256xf32>, vector<8x256xf32> -> vector<24x256xf32>
    %c0_23 = arith.constant 0 : index
    %c0_24 = arith.constant 0 : index
    %c0_25 = arith.constant 0 : index
    %76 = vector.load %arg4[%c0_23, %c0_24, %c0_25] : memref<3x8x24xf32, #tpu.memory_space<vmem>>, vector<1x8x24xf32>
    %77 = vector.shape_cast %76 : vector<1x8x24xf32> to vector<8x24xf32>
    %cst_26 = arith.constant dense<0.000000e+00> : vector<8x256xf32>
    %78 = tpu.matmul %77, %75, %cst_26 {dimension_numbers = #tpu.dot_dimension_numbers<[1], [0], [0], [1], [0, 0, 1, 1], [], []>} : vector<8x24xf32>, vector<24x256xf32>, vector<8x256xf32> -> vector<8x256xf32>
    %c0_27 = arith.constant 0 : index
    %c0_28 = arith.constant 0 : index
    %c0_29 = arith.constant 0 : index
    %79 = vector.load %arg5[%c0_27, %c0_28, %c0_29] : memref<3x8x1xf32, #tpu.memory_space<vmem>>, vector<1x8x1xf32>
    %80 = vector.shape_cast %79 : vector<1x8x1xf32> to vector<8x1xf32>
    %81 = vector.broadcast %80 : vector<8x1xf32> to vector<8x256xf32>
    %82 = arith.addf %78, %81 : vector<8x256xf32>
    %cst_30 = arith.constant 0.000000e+00 : f32
    %83 = vector.broadcast %cst_30 : f32 to vector<8x256xf32>
    %84 = arith.maximumf %82, %83 : vector<8x256xf32>
    %c1_i32_31 = arith.constant 1 : i32
    %85 = tpu.dynamic_rotate %84 by %c1_i32_31 dim 1 : vector<8x256xf32>, i32 -> vector<8x256xf32>
    %cst_32 = arith.constant 0.000000e+00 : f32
    %86 = vector.shape_cast %18 : vector<1x256xi1> to vector<1x256xi1>
    %87 = vector.broadcast %86 : vector<1x256xi1> to vector<8x256xi1>
    %88 = vector.broadcast %cst_32 : f32 to vector<8x256xf32>
    %89 = arith.select %87, %88, %85 : vector<8x256xi1>, vector<8x256xf32>
    %c255_i32_33 = arith.constant 255 : i32
    %90 = tpu.dynamic_rotate %84 by %c255_i32_33 dim 1 : vector<8x256xf32>, i32 -> vector<8x256xf32>
    %cst_34 = arith.constant 0.000000e+00 : f32
    %91 = vector.shape_cast %36 : vector<1x256xi1> to vector<1x256xi1>
    %92 = vector.broadcast %91 : vector<1x256xi1> to vector<8x256xi1>
    %93 = vector.broadcast %cst_34 : f32 to vector<8x256xf32>
    %94 = arith.select %92, %93, %90 : vector<8x256xi1>, vector<8x256xf32>
    %95 = tpu.concatenate %89, %84, %94 in 0 : vector<8x256xf32>, vector<8x256xf32>, vector<8x256xf32> -> vector<24x256xf32>
    %c1 = arith.constant 1 : index
    %c0_35 = arith.constant 0 : index
    %c0_36 = arith.constant 0 : index
    %96 = vector.load %arg4[%c1, %c0_35, %c0_36] : memref<3x8x24xf32, #tpu.memory_space<vmem>>, vector<1x8x24xf32>
    %97 = vector.shape_cast %96 : vector<1x8x24xf32> to vector<8x24xf32>
    %cst_37 = arith.constant dense<0.000000e+00> : vector<8x256xf32>
    %98 = tpu.matmul %97, %95, %cst_37 {dimension_numbers = #tpu.dot_dimension_numbers<[1], [0], [0], [1], [0, 0, 1, 1], [], []>} : vector<8x24xf32>, vector<24x256xf32>, vector<8x256xf32> -> vector<8x256xf32>
    %c1_38 = arith.constant 1 : index
    %c0_39 = arith.constant 0 : index
    %c0_40 = arith.constant 0 : index
    %99 = vector.load %arg5[%c1_38, %c0_39, %c0_40] : memref<3x8x1xf32, #tpu.memory_space<vmem>>, vector<1x8x1xf32>
    %100 = vector.shape_cast %99 : vector<1x8x1xf32> to vector<8x1xf32>
    %101 = vector.broadcast %100 : vector<8x1xf32> to vector<8x256xf32>
    %102 = arith.addf %98, %101 : vector<8x256xf32>
    %cst_41 = arith.constant 0.000000e+00 : f32
    %103 = vector.broadcast %cst_41 : f32 to vector<8x256xf32>
    %104 = arith.maximumf %102, %103 : vector<8x256xf32>
    %c1_i32_42 = arith.constant 1 : i32
    %105 = tpu.dynamic_rotate %104 by %c1_i32_42 dim 1 : vector<8x256xf32>, i32 -> vector<8x256xf32>
    %cst_43 = arith.constant 0.000000e+00 : f32
    %106 = vector.shape_cast %18 : vector<1x256xi1> to vector<1x256xi1>
    %107 = vector.broadcast %106 : vector<1x256xi1> to vector<8x256xi1>
    %108 = vector.broadcast %cst_43 : f32 to vector<8x256xf32>
    %109 = arith.select %107, %108, %105 : vector<8x256xi1>, vector<8x256xf32>
    %c255_i32_44 = arith.constant 255 : i32
    %110 = tpu.dynamic_rotate %104 by %c255_i32_44 dim 1 : vector<8x256xf32>, i32 -> vector<8x256xf32>
    %cst_45 = arith.constant 0.000000e+00 : f32
    %111 = vector.shape_cast %36 : vector<1x256xi1> to vector<1x256xi1>
    %112 = vector.broadcast %111 : vector<1x256xi1> to vector<8x256xi1>
    %113 = vector.broadcast %cst_45 : f32 to vector<8x256xf32>
    %114 = arith.select %112, %113, %110 : vector<8x256xi1>, vector<8x256xf32>
    %115 = tpu.concatenate %109, %104, %114 in 0 : vector<8x256xf32>, vector<8x256xf32>, vector<8x256xf32> -> vector<24x256xf32>
    %c2 = arith.constant 2 : index
    %c0_46 = arith.constant 0 : index
    %c0_47 = arith.constant 0 : index
    %116 = vector.load %arg4[%c2, %c0_46, %c0_47] : memref<3x8x24xf32, #tpu.memory_space<vmem>>, vector<1x8x24xf32>
    %117 = vector.shape_cast %116 : vector<1x8x24xf32> to vector<8x24xf32>
    %cst_48 = arith.constant dense<0.000000e+00> : vector<8x256xf32>
    %118 = tpu.matmul %117, %115, %cst_48 {dimension_numbers = #tpu.dot_dimension_numbers<[1], [0], [0], [1], [0, 0, 1, 1], [], []>} : vector<8x24xf32>, vector<24x256xf32>, vector<8x256xf32> -> vector<8x256xf32>
    %c2_49 = arith.constant 2 : index
    %c0_50 = arith.constant 0 : index
    %c0_51 = arith.constant 0 : index
    %119 = vector.load %arg5[%c2_49, %c0_50, %c0_51] : memref<3x8x1xf32, #tpu.memory_space<vmem>>, vector<1x8x1xf32>
    %120 = vector.shape_cast %119 : vector<1x8x1xf32> to vector<8x1xf32>
    %121 = vector.broadcast %120 : vector<8x1xf32> to vector<8x256xf32>
    %122 = arith.addf %118, %121 : vector<8x256xf32>
    %cst_52 = arith.constant 0.000000e+00 : f32
    %123 = vector.broadcast %cst_52 : f32 to vector<8x256xf32>
    %124 = arith.maximumf %122, %123 : vector<8x256xf32>
    %125 = vector.shape_cast %124 : vector<8x256xf32> to vector<8x2x128xf32>
    %c0_53 = arith.constant 0 : index
    %c0_54 = arith.constant 0 : index
    %c0_55 = arith.constant 0 : index
    %126 = vector.load %arg6[%c0_53, %c0_54, %c0_55] : memref<8x16x128xf32, #tpu.memory_space<vmem>>, vector<8x16x128xf32>
    %cst_56 = arith.constant dense<0.000000e+00> : vector<8x16x2xf32>
    %127 = tpu.matmul %126, %125, %cst_56 {dimension_numbers = #tpu.dot_dimension_numbers<[2], [2], [1], [1], [0, 0, 0, 1, 1, 1], [0], [0]>} : vector<8x16x128xf32>, vector<8x2x128xf32>, vector<8x16x2xf32> -> vector<8x16x2xf32>
    %cst_57 = arith.constant dense<0.000000e+00> : vector<16x2xf32>
    %128 = vector.multi_reduction <add>, %127, %cst_57 [0] : vector<8x16x2xf32> to vector<16x2xf32>
    %c0_58 = arith.constant 0 : index
    %c0_59 = arith.constant 0 : index
    %129 = vector.load %arg7[%c0_58, %c0_59] : memref<16x1xf32, #tpu.memory_space<vmem>>, vector<16x1xf32>
    %130 = vector.broadcast %129 : vector<16x1xf32> to vector<16x2xf32>
    %131 = arith.addf %128, %130 : vector<16x2xf32>
    %cst_60 = arith.constant 0.000000e+00 : f32
    %132 = vector.broadcast %cst_60 : f32 to vector<16x2xf32>
    %133 = arith.maximumf %131, %132 : vector<16x2xf32>
    %c0_61 = arith.constant 0 : index
    %c0_62 = arith.constant 0 : index
    %134 = vector.load %arg8[%c0_61, %c0_62] : memref<16x1xf32, #tpu.memory_space<vmem>>, vector<16x1xf32>
    %135 = vector.broadcast %134 : vector<16x1xf32> to vector<16x2xf32>
    %136 = arith.mulf %135, %133 : vector<16x2xf32>
    %cst_63 = arith.constant dense<0.000000e+00> : vector<2xf32>
    %137 = vector.multi_reduction <add>, %136, %cst_63 [0] : vector<16x2xf32> to vector<2xf32>
    %138 = vector.shape_cast %137 : vector<2xf32> to vector<1x2xf32>
    %c0_64 = arith.constant 0 : index
    %c0_65 = arith.constant 0 : index
    %139 = vector.load %arg9[%c0_64, %c0_65] : memref<1x1xf32, #tpu.memory_space<vmem>>, vector<1x1xf32>
    %140 = vector.broadcast %139 : vector<1x1xf32> to vector<1x2xf32>
    %141 = arith.addf %138, %140 : vector<1x2xf32>
    %142 = arith.negf %141 : vector<1x2xf32>
    %143 = math.exp %142 : vector<1x2xf32>
    %cst_66 = arith.constant 1.000000e+00 : f32
    %144 = vector.broadcast %cst_66 : f32 to vector<1x2xf32>
    %145 = arith.addf %144, %143 : vector<1x2xf32>
    %146 = arith.divf %144, %145 : vector<1x2xf32>
    %c0_67 = arith.constant 0 : index
    %c0_68 = arith.constant 0 : index
    %c0_69 = arith.constant 0 : index
    %147 = vector.load %arg10[%c0_67, %c0_68, %c0_69] : memref<1x1x2xf32, #tpu.memory_space<vmem>>, vector<1x1x2xf32>
    %148 = vector.shape_cast %147 : vector<1x1x2xf32> to vector<1x2xf32>
    %149 = vector.shape_cast %146 : vector<1x2xf32> to vector<1x1x2xf32>
    tpu.vector_store %arg10[%c0_67, %c0_68, %c0_69], %149 {strides = array<i32>} : memref<1x1x2xf32, #tpu.memory_space<vmem>>, vector<1x1x2xf32>,
    return
  }
  func.func @transform_0(%arg0: i32) -> (i32, i32, i32) {
    %c0_i32 = arith.constant 0 : i32
    %c0_i32_0 = arith.constant 0 : i32
    %c0_i32_1 = arith.constant 0 : i32
    return %arg0, %c0_i32, %c0_i32_0 : i32, i32, i32
  }
  func.func @transform_1(%arg0: i32) -> (i32, i32) {
    %c0_i32 = arith.constant 0 : i32
    %c0_i32_0 = arith.constant 0 : i32
    %c0_i32_1 = arith.constant 0 : i32
    return %c0_i32, %c0_i32_0 : i32, i32
  }
  func.func @transform_2(%arg0: i32) -> (i32, i32) {
    %c0_i32 = arith.constant 0 : i32
    %c0_i32_0 = arith.constant 0 : i32
    %c0_i32_1 = arith.constant 0 : i32
    return %c0_i32, %c0_i32_0 : i32, i32
  }
  func.func @transform_3(%arg0: i32) -> (i32, i32, i32) {
    %c0_i32 = arith.constant 0 : i32
    %c0_i32_0 = arith.constant 0 : i32
    %c0_i32_1 = arith.constant 0 : i32
    %c0_i32_2 = arith.constant 0 : i32
    return %c0_i32, %c0_i32_0, %c0_i32_1 : i32, i32, i32
  }
  func.func @transform_4(%arg0: i32) -> (i32, i32, i32) {
    %c0_i32 = arith.constant 0 : i32
    %c0_i32_0 = arith.constant 0 : i32
    %c0_i32_1 = arith.constant 0 : i32
    %c0_i32_2 = arith.constant 0 : i32
    return %c0_i32, %c0_i32_0, %c0_i32_1 : i32, i32, i32
  }
  func.func @transform_5(%arg0: i32) -> (i32, i32, i32) {
    %c0_i32 = arith.constant 0 : i32
    %c0_i32_0 = arith.constant 0 : i32
    %c0_i32_1 = arith.constant 0 : i32
    %c0_i32_2 = arith.constant 0 : i32
    return %c0_i32, %c0_i32_0, %c0_i32_1 : i32, i32, i32
  }
  func.func @transform_6(%arg0: i32) -> (i32, i32) {
    %c0_i32 = arith.constant 0 : i32
    %c0_i32_0 = arith.constant 0 : i32
    %c0_i32_1 = arith.constant 0 : i32
    return %c0_i32, %c0_i32_0 : i32, i32
  }
  func.func @transform_7(%arg0: i32) -> (i32, i32) {
    %c0_i32 = arith.constant 0 : i32
    %c0_i32_0 = arith.constant 0 : i32
    %c0_i32_1 = arith.constant 0 : i32
    return %c0_i32, %c0_i32_0 : i32, i32
  }
  func.func @transform_8(%arg0: i32) -> (i32, i32) {
    %c0_i32 = arith.constant 0 : i32
    %c0_i32_0 = arith.constant 0 : i32
    %c0_i32_1 = arith.constant 0 : i32
    return %c0_i32, %c0_i32_0 : i32, i32
  }
  func.func @transform_9(%arg0: i32) -> (i32, i32, i32) {
    %c0_i32 = arith.constant 0 : i32
    %c0_i32_0 = arith.constant 0 : i32
    %c0_i32_1 = arith.constant 0 : i32
    return %arg0, %c0_i32, %c0_i32_0 : i32, i32, i32
  }
}

</mosaic_0001>

<llo_original>
// kernel: ecg_cnn_forward.1
$region0: #{ecg_cnn_forward.1}
  #allocation0 [shape = 'u32[]', space=smem, size = 0x4, offset = 0x4, fixed_abs, tag = 'smem constant byte address 0x4 - core index']
  #allocation1 [shape = 'u32[144,128]{1,0:T(1,128)}', space=vmem, size = 0x12000, scoped, tag = 'internal scratch']
  #allocation2 [shape = 'f32[1,1]{1,0:T(1,128)S(1)}', space=vmem, size = 0x200, scoped, tag = 'scoped memory for ecg_cnn_forward.1']
  %s0 = inlined_call_operand.vmem [shape: f32[1,1,256], index: 0, kind: input, shape index: {}]
  %s1 = inlined_call_operand.vmem [shape: f32[8,3], index: 1, kind: input, shape index: {}]
  %s2 = inlined_call_operand.vmem [shape: f32[8,1], index: 2, kind: input, shape index: {}]
  %s3 = inlined_call_operand.vmem [shape: f32[3,8,24], index: 3, kind: input, shape index: {}]
  %s4 = inlined_call_operand.vmem [shape: f32[3,8,1], index: 4, kind: input, shape index: {}]
  %s5 = inlined_call_operand.hbm [shape: f32[8,16,128], index: 5, kind: input, shape index: {}]
  %s6 = inlined_call_operand.vmem [shape: f32[16,1], index: 6, kind: input, shape index: {}]
  %s7 = inlined_call_operand.vmem [shape: f32[16,1], index: 7, kind: input, shape index: {}]
  %s8 = inlined_call_operand.<no memory space> [shape: f32[1,1], index: 8, kind: input, shape index: {}]
  %s9 = inlined_call_operand.hbm [shape: f32[1,1,2], index: 9, kind: output, shape index: {}]
  %s10 = sld [smem:[#allocation0]]
  $region50: #{ecg_cnn_forward.1} parent=0
    _
  %s12 = ssub.s32 1, %s10
  %s13 = scalar_select 0, %s12, %s10
  %v14 = vstv %s8
  %15 = vst [vmem:[#allocation2] sm:$0x1] %v14
  $region1: #{ecg_cnn_forward.1} parent=0
    #allocation3 [shape = 'u8[65536]{0}', space=vmem, size = 0x10000, scoped, tag = 'input window, operand 5, single buffered']
    #allocation4 [shape = 's32[1]{0}', space=sflag, size = 0x4, scoped, tag = 'scoped memory for ecg_cnn_forward.1']
    #allocation5 [shape = 's32[1]{0}', space=sflag, size = 0x4, scoped, tag = 'scoped memory for ecg_cnn_forward.1']
    #allocation6 [shape = 'u8[512]{0}', space=vmem, size = 0x400, scoped, tag = 'output window, operand 0, single buffered']
    %16 = vsyncpa [#allocation4], 0
    %17 = vsyncpa [#allocation5], 0
    // Predicated region
    $region2: #{ecg_cnn_forward.1} parent=1 // pred_check
      _
    $region3: #{ecg_cnn_forward.1} parent=1 // pred_check_branch
      %19 = sbr.rel (0) target = $region5
    $region4: #{ecg_cnn_forward.1} parent=1 // pred_region
      _
    $region5: #{ecg_cnn_forward.1} parent=1 // pred_fallthru
      _
    // Predicated region
    $region6: #{ecg_cnn_forward.1} parent=1 // pred_check
      _
    $region7: #{ecg_cnn_forward.1} parent=1 // pred_check_branch
      %21 = sbr.rel (0) target = $region9
    $region8: #{ecg_cnn_forward.1} parent=1 // pred_region
      _
    $region9: #{ecg_cnn_forward.1} parent=1 // pred_fallthru
      _
    // Predicated region
    $region10: #{ecg_cnn_forward.1} parent=1 // pred_check
      _
    $region11: #{ecg_cnn_forward.1} parent=1 // pred_check_branch
      %23 = sbr.rel (0) target = $region13
    $region12: #{ecg_cnn_forward.1} parent=1 // pred_region
      _
    $region13: #{ecg_cnn_forward.1} parent=1 // pred_fallthru
      _
    // Predicated region
    $region14: #{ecg_cnn_forward.1} parent=1 // pred_check
      _
    $region15: #{ecg_cnn_forward.1} parent=1 // pred_check_branch
      %25 = sbr.rel (0) target = $region17
    $region16: #{ecg_cnn_forward.1} parent=1 // pred_region
      _
    $region17: #{ecg_cnn_forward.1} parent=1 // pred_fallthru
      _
    // Predicated region
    $region18: #{ecg_cnn_forward.1} parent=1 // pred_check
      _
    $region19: #{ecg_cnn_forward.1} parent=1 // pred_check_branch
      %27 = sbr.rel (0) target = $region21
    $region20: #{ecg_cnn_forward.1} parent=1 // pred_region
      _
    $region21: #{ecg_cnn_forward.1} parent=1 // pred_fallthru
      _
    // Predicated region
    $region22: #{ecg_cnn_forward.1} parent=1 // pred_check
      _
    $region23: #{ecg_cnn_forward.1} parent=1 // pred_check_branch
      %29 = sbr.rel (0) target = $region25
    $region24: #{ecg_cnn_forward.1} parent=1 // pred_region
      %s31 = ssub.s32 2048, 2048
      %32 = vsyncadd [#allocation4], %s31
      %s33 = sshll.u32 [#allocation3], 4
      %s34 = int_to_ptr.vmem [resolvable:$true] %s33
      %39 = dma.hbm_to_vmem [thread:$0]  %s5, 2048, %s34, [#allocation4], 128, 128, 8
    $region25: #{ecg_cnn_forward.1} parent=1 // pred_fallthru
      _
    // Predicated region
    $region26: #{ecg_cnn_forward.1} parent=1 // pred_check
      _
    $region27: #{ecg_cnn_forward.1} parent=1 // pred_check_branch
      %41 = sbr.rel (0) target = $region29
    $region28: #{ecg_cnn_forward.1} parent=1 // pred_region
      _
    $region29: #{ecg_cnn_forward.1} parent=1 // pred_fallthru
      _
    // Predicated region
    $region30: #{ecg_cnn_forward.1} parent=1 // pred_check
      _
    $region31: #{ecg_cnn_forward.1} parent=1 // pred_check_branch
      %43 = sbr.rel (0) target = $region33
    $region32: #{ecg_cnn_forward.1} parent=1 // pred_region
      _
    $region33: #{ecg_cnn_forward.1} parent=1 // pred_fallthru
      _
    // Predicated region
    $region34: #{ecg_cnn_forward.1} parent=1 // pred_check
      _
    $region35: #{ecg_cnn_forward.1} parent=1 // pred_check_branch
      %45 = sbr.rel (0) target = $region37
    $region36: #{ecg_cnn_forward.1} parent=1 // pred_region
      _
    $region37: #{ecg_cnn_forward.1} parent=1 // pred_fallthru
      _
    // Predicated region
    $region38: #{ecg_cnn_forward.1} parent=1 // pred_check
      _
    $region39: #{ecg_cnn_forward.1} parent=1 // pred_check_branch
      %47 = sbr.rel (0) target = $region41
    $region40: #{ecg_cnn_forward.1} parent=1 // pred_region
      %48 = dma.done [#allocation4], 2048
    $region41: #{ecg_cnn_forward.1} parent=1 // pred_fallthru
      _
    %v49 = vlaneseq
    %v50 = vand.u32 %v49, 127
    %v51 = vadd.s32 %v50, 128
    %vm52 = vcmp.lt.s32.totalorder %v50, 0
    %v53 = vsub.s32 0, %v50
    %v54 = vsel %vm52, %v53, %v50
    %v55 = vshrl.u32 %v54, 7
    %v56 = vand.u32 %v54, 127
    %v57 = vsub.s32 0, %v56
    %v58 = vsel %vm52, %v57, %v56
    %vm59 = vcmp.lt.s32.totalorder %v51, 0
    %v60 = vsub.s32 0, %v51
    %v61 = vsel %vm59, %v60, %v51
    %v62 = vshrl.u32 %v61, 7
    %v63 = vand.u32 %v61, 127
    %v64 = vsub.s32 0, %v63
    %v65 = vsel %vm59, %v64, %v63
    %vm66 = vcmp.ne.s32.totalorder %v58, 0
    %vm67 = vcmp.ne.s32.totalorder %v65, 0
    %vm68 = vcmp.lt.s32.totalorder %v58, 0
    %vm69 = vcmp.lt.s32.totalorder %v65, 0
    %vm70 = vmand %vm68, %vm66
    %vm71 = vmand %vm69, %vm67
    %v72 = vadd.s32 %v58, 128
    %v73 = vadd.s32 %v65, 128
    %v74 = vsel %vm70, %v72, %v58
    %v75 = vsel %vm71, %v73, %v65
    %vm76 = vcmp.eq.s32.totalorder %v74, 0
    %vm77 = vcmp.eq.s32.totalorder %v75, 0
    %vm78 = vcmp.eq.s32.totalorder %v74, 127
    %vm79 = vcmp.eq.s32.totalorder %v75, 127
    %v80 = vld [vmem:[%s0] sm:$0x3]
    %v82 = vlaneseq
    %v83 = vshrl.u32 %v82, 7
    %v84 = vsub.s32 0, %v83
    %v85 = vrot.slane %v80, %v84
    %v86 = vlaneseq
    %v87 = vshrl.u32 %v86, 7
    %v88 = vsub.s32 1, %v87
    %v89 = vrot.slane %v80, %v88
    %92 = vrot.lane.b32.xlu0 %v85, 1
    %v93 = vpop.permute.xlu0 %92
    %94 = vrot.lane.b32.xlu0 %v89, 1
    %v95 = vpop.permute.xlu0 %94
    %vm96 = vcmp.lt.s32.totalorder %v50, 1
    %v97 = vsel %vm96, %v93, %v95
    %v98 = vsel %vm96, %v95, %v93
    %v99 = vsel %vm76, 0.0, %v98
    %v100 = vsel %vm77, 0.0, %v97
    %101 = vrot.lane.b32.xlu0 %v85, 127
    %v102 = vpop.permute.xlu0 %101
    %103 = vrot.lane.b32.xlu0 %v89, 127
    %v104 = vpop.permute.xlu0 %103
    %vm105 = vcmp.lt.s32.totalorder %v50, 127
    %v106 = vsel %vm105, %v102, %v104
    %v107 = vsel %vm105, %v104, %v102
    %v108 = vsel %vm78, 0.0, %v106
    %v109 = vsel %vm79, 0.0, %v107
    %v110 = vld [vmem:[%s1] sm:$0xff]
    %112 = vset.pattern.permute.xlu0 0
    %113 = vperm.xlu0 %112, %v110
    %v114 = vpop.permute.xlu0 %113
    %v116 = vlaneseq
    %v117 = vshrl.u32 %v116, 7
    %v118 = vsub.s32 0, %v117
    %v119 = vrot.slane %v99, %v118
    %v120 = vlaneseq
    %v121 = vshrl.u32 %v120, 7
    %v122 = vsub.s32 0, %v121
    %v123 = vrot.slane %v100, %v122
    %v124 = vmul.f32 %v114, %v119
    %v125 = vmul.f32 %v114, %v123
    %126 = vset.pattern.permute.xlu0 1
    %127 = vperm.xlu0 %126, %v110
    %v128 = vpop.permute.xlu0 %127
    %v130 = vmul.f32 %v128, %v85
    %v131 = vmul.f32 %v128, %v89
    %v132 = vadd.f32 %v124, %v130
    %v133 = vadd.f32 %v125, %v131
    %134 = vset.pattern.permute.xlu0 2
    %135 = vperm.xlu0 %134, %v110
    %v136 = vpop.permute.xlu0 %135
    %v138 = vlaneseq
    %v139 = vshrl.u32 %v138, 7
    %v140 = vsub.s32 0, %v139
    %v141 = vrot.slane %v108, %v140
    %v142 = vlaneseq
    %v143 = vshrl.u32 %v142, 7
    %v144 = vsub.s32 0, %v143
    %v145 = vrot.slane %v109, %v144
    %v146 = vmul.f32 %v136, %v141
    %v147 = vmul.f32 %v136, %v145
    %v148 = vadd.f32 %v132, %v146
    %v149 = vadd.f32 %v133, %v147
    %v150 = vld [vmem:[%s2] sm:$0xff]
    %152 = vset.pattern.permute.xlu0 0
    %153 = vperm.xlu0 %152, %v150
    %v154 = vpop.permute.xlu0 %153
    %v156 = vadd.f32 %v148, %v154
    %v157 = vadd.f32 %v149, %v154
    %v158 = vmax.f32 %v156, 0.0
    %v159 = vmax.f32 %v157, 0.0
    %160 = vrot.lane.b32.xlu0 %v158, 1
    %v161 = vpop.permute.xlu0 %160
    %162 = vrot.lane.b32.xlu0 %v159, 1
    %v163 = vpop.permute.xlu0 %162
    %v164 = vsel %vm96, %v161, %v163
    %v165 = vsel %vm96, %v163, %v161
    %v166 = vsel %vm76, 1, 0
    %v167 = vsel %vm77, 1, 0
    %vm168 = vcmp.eq.s32.totalorder %v166, 1
    %vm169 = vcmp.eq.s32.totalorder %v167, 1
    %v170 = vsel %vm168, 0.0, %v165
    %v171 = vsel %vm169, 0.0, %v164
    %172 = vrot.lane.b32.xlu0 %v158, 127
    %v173 = vpop.permute.xlu0 %172
    %174 = vrot.lane.b32.xlu0 %v159, 127
    %v175 = vpop.permute.xlu0 %174
    %v176 = vsel %vm105, %v173, %v175
    %v177 = vsel %vm105, %v175, %v173
    %v178 = vsel %vm78, 1, 0
    %v179 = vsel %vm79, 1, 0
    %vm180 = vcmp.eq.s32.totalorder %v178, 1
    %vm181 = vcmp.eq.s32.totalorder %v179, 1
    %v182 = vsel %vm180, 0.0, %v176
    %v183 = vsel %vm181, 0.0, %v177
    %v184 = vld [vmem:[%s3] sm:$0xff]
    %v185 = vld [vmem:[%s4] sm:$0xff]
    %187 = vset.pattern.permute.xlu0 0
    %188 = vperm.xlu0 %187, %v185
    %v189 = vpop.permute.xlu0 %188
    %vm191 = vcmask 195584
    %v193 = vsel %vm191, %v184, 0
    %195 = vmatprep.subr.mxu0 %v171
    %196 = vmatpush1.msra.mxu0 %v170
    %197 = vmatprep.subr.mxu0 %v159
    %198 = vmatpush1.msra.mxu0 %v158
    %199 = vmatprep.subr.mxu0 %v183
    %200 = vmatpush1.msra.mxu0 %v182
    %201 = vmatprep.subr.mxu0 0.0
    %202 = vmatpush1.msra.mxu0 0.0
    %203 = vmatprep.subr.mxu0 0.0
    %204 = vmatpush1.msra.mxu0 0.0
    %205 = vmatprep.subr.mxu0 0.0
    %206 = vmatpush1.msra.mxu0 0.0
    %207 = vmatprep.subr.mxu0 0.0
    %208 = vmatpush1.msra.mxu0 0.0
    %209 = vmatprep.subr.mxu0 0.0
    %210 = vmatpush1.msra.mxu0 0.0
    %211 = vmatprep.subr.mxu0 0.0
    %212 = vmatpush1.msra.mxu0 0.0
    %213 = vmatprep.subr.mxu0 0.0
    %214 = vmatpush1.msra.mxu0 0.0
    %215 = vmatprep.subr.mxu0 0.0
    %216 = vmatpush1.msra.mxu0 0.0
    %217 = vmatprep.subr.mxu0 0.0
    %218 = vmatpush1.msra.mxu0 0.0
    %219 = vmatprep.subr.mxu0 0.0
    %220 = vmatpush1.msra.mxu0 0.0
    %221 = vmatprep.subr.mxu0 0.0
    %222 = vmatpush1.msra.mxu0 0.0
    %223 = vmatprep.subr.mxu0 0.0
    %224 = vmatpush1.msra.mxu0 0.0
    %225 = vmatprep.subr.mxu0 0.0
    %226 = vmatpush1.msra.mxu0 0.0
    %227 = vmatprep.subr.mxu0 0.0
    %228 = vmatpush1.msra.mxu0 0.0
    %229 = vmatprep.subr.mxu0 0.0
    %230 = vmatpush1.msra.mxu0 0.0
    %231 = vmatprep.subr.mxu0 0.0
    %232 = vmatpush1.msra.mxu0 0.0
    %233 = vmatprep.subr.mxu0 0.0
    %234 = vmatpush1.msra.mxu0 0.0
    %235 = vmatprep.subr.mxu0 0.0
    %236 = vmatpush1.msra.mxu0 0.0
    %237 = vmatprep.subr.mxu0 0.0
    %238 = vmatpush1.msra.mxu0 0.0
    %239 = vmatprep.subr.mxu0 0.0
    %240 = vmatpush1.msra.mxu0 0.0
    %241 = vmatprep.subr.mxu0 0.0
    %242 = vmatpush1.msra.mxu0 0.0
    %243 = vmatprep.subr.mxu0 0.0
    %244 = vmatpush1.msra.mxu0 0.0
    %245 = vmatprep.subr.mxu0 0.0
    %246 = vmatpush1.msra.mxu0 0.0
    %247 = vmatprep.subr.mxu0 0.0
    %248 = vmatpush1.msra.mxu0 0.0
    %249 = vmatprep.subr.mxu0 0.0
    %250 = vmatpush1.msra.mxu0 0.0
    %251 = vmatprep.subr.mxu0 0.0
    %252 = vmatpush1.msra.mxu0 0.0
    %253 = vmatprep.subr.mxu0 0.0
    %254 = vmatpush1.msra.mxu0 0.0
    %255 = vmatprep.subr.mxu0 0.0
    %256 = vmatpush1.msra.mxu0 0.0
    %257 = vmatprep.subr.mxu0 0.0
    %258 = vmatpush1.msra.mxu0 0.0
    %259 = vmatprep.mubr.f32.mxu0 0.0
    %260 = vmatmul.mubr.f32.gmra.mrb[0].mxu0 %v193
    %v261 = vpop.f32.mrb[0].mxu0
    %v262 = vadd.f32 %v189, %v261
    %v263 = vpop.f32.mrb[0].mxu0
    %v264 = vadd.f32 %v189, %v263
    %265 = vdwg.mxu0
    %v266 = vmax.f32 %v262, 0.0
    %v267 = vmax.f32 %v264, 0.0
    %268 = vrot.lane.b32.xlu0 %v266, 1
    %v269 = vpop.permute.xlu0 %268
    %270 = vrot.lane.b32.xlu0 %v267, 1
    %v271 = vpop.permute.xlu0 %270
    %v272 = vsel %vm96, %v269, %v271
    %v273 = vsel %vm96, %v271, %v269
    %v274 = vsel %vm168, 0.0, %v273
    %v275 = vsel %vm169, 0.0, %v272
    %276 = vrot.lane.b32.xlu0 %v266, 127
    %v277 = vpop.permute.xlu0 %276
    %278 = vrot.lane.b32.xlu0 %v267, 127
    %v279 = vpop.permute.xlu0 %278
    %v280 = vsel %vm105, %v277, %v279
    %v281 = vsel %vm105, %v279, %v277
    %v282 = vsel %vm180, 0.0, %v280
    %v283 = vsel %vm181, 0.0, %v281
    %s284 = scalar_lea.vmem %s3, 8
    %v285 = vld [vmem:[%s284] sm:$0xff]
    %s286 = scalar_lea.vmem %s4, 8
    %v287 = vld [vmem:[%s286] sm:$0xff]
    %289 = vset.pattern.permute.xlu0 0
    %290 = vperm.xlu0 %289, %v287
    %v291 = vpop.permute.xlu0 %290
    %v294 = vsel %vm191, %v285, 0
    %296 = vmatprep.subr.mxu0 %v275
    %297 = vmatpush1.msra.mxu0 %v274
    %298 = vmatprep.subr.mxu0 %v267
    %299 = vmatpush1.msra.mxu0 %v266
    %300 = vmatprep.subr.mxu0 %v283
    %301 = vmatpush1.msra.mxu0 %v282
    %302 = vmatprep.subr.mxu0 0.0
    %303 = vmatpush1.msra.mxu0 0.0
    %304 = vmatprep.subr.mxu0 0.0
    %305 = vmatpush1.msra.mxu0 0.0
    %306 = vmatprep.subr.mxu0 0.0
    %307 = vmatpush1.msra.mxu0 0.0
    %308 = vmatprep.subr.mxu0 0.0
    %309 = vmatpush1.msra.mxu0 0.0
    %310 = vmatprep.subr.mxu0 0.0
    %311 = vmatpush1.msra.mxu0 0.0
    %312 = vmatprep.subr.mxu0 0.0
    %313 = vmatpush1.msra.mxu0 0.0
    %314 = vmatprep.subr.mxu0 0.0
    %315 = vmatpush1.msra.mxu0 0.0
    %316 = vmatprep.subr.mxu0 0.0
    %317 = vmatpush1.msra.mxu0 0.0
    %318 = vmatprep.subr.mxu0 0.0
    %319 = vmatpush1.msra.mxu0 0.0
    %320 = vmatprep.subr.mxu0 0.0
    %321 = vmatpush1.msra.mxu0 0.0
    %322 = vmatprep.subr.mxu0 0.0
    %323 = vmatpush1.msra.mxu0 0.0
    %324 = vmatprep.subr.mxu0 0.0
    %325 = vmatpush1.msra.mxu0 0.0
    %326 = vmatprep.subr.mxu0 0.0
    %327 = vmatpush1.msra.mxu0 0.0
    %328 = vmatprep.subr.mxu0 0.0
    %329 = vmatpush1.msra.mxu0 0.0
    %330 = vmatprep.subr.mxu0 0.0
    %331 = vmatpush1.msra.mxu0 0.0
    %332 = vmatprep.subr.mxu0 0.0
    %333 = vmatpush1.msra.mxu0 0.0
    %334 = vmatprep.subr.mxu0 0.0
    %335 = vmatpush1.msra.mxu0 0.0
    %336 = vmatprep.subr.mxu0 0.0
    %337 = vmatpush1.msra.mxu0 0.0
    %338 = vmatprep.subr.mxu0 0.0
    %339 = vmatpush1.msra.mxu0 0.0
    %340 = vmatprep.subr.mxu0 0.0
    %341 = vmatpush1.msra.mxu0 0.0
    %342 = vmatprep.subr.mxu0 0.0
    %343 = vmatpush1.msra.mxu0 0.0
    %344 = vmatprep.subr.mxu0 0.0
    %345 = vmatpush1.msra.mxu0 0.0
    %346 = vmatprep.subr.mxu0 0.0
    %347 = vmatpush1.msra.mxu0 0.0
    %348 = vmatprep.subr.mxu0 0.0
    %349 = vmatpush1.msra.mxu0 0.0
    %350 = vmatprep.subr.mxu0 0.0
    %351 = vmatpush1.msra.mxu0 0.0
    %352 = vmatprep.subr.mxu0 0.0
    %353 = vmatpush1.msra.mxu0 0.0
    %354 = vmatprep.subr.mxu0 0.0
    %355 = vmatpush1.msra.mxu0 0.0
    %356 = vmatprep.subr.mxu0 0.0
    %357 = vmatpush1.msra.mxu0 0.0
    %358 = vmatprep.subr.mxu0 0.0
    %359 = vmatpush1.msra.mxu0 0.0
    %360 = vmatprep.mubr.f32.mxu0 0.0
    %361 = vmatmul.mubr.f32.gmra.mrb[0].mxu0 %v294
    %v362 = vpop.f32.mrb[0].mxu0
    %v363 = vadd.f32 %v291, %v362
    %v364 = vpop.f32.mrb[0].mxu0
    %v365 = vadd.f32 %v291, %v364
    %366 = vdwg.mxu0
    %v367 = vmax.f32 %v363, 0.0
    %v368 = vmax.f32 %v365, 0.0
    %369 = vrot.lane.b32.xlu0 %v367, 1
    %v370 = vpop.permute.xlu0 %369
    %371 = vrot.lane.b32.xlu0 %v368, 1
    %v372 = vpop.permute.xlu0 %371
    %v373 = vsel %vm96, %v370, %v372
    %v374 = vsel %vm96, %v372, %v370
    %v375 = vsel %vm168, 0.0, %v374
    %v376 = vsel %vm169, 0.0, %v373
    %377 = vrot.lane.b32.xlu0 %v367, 127
    %v378 = vpop.permute.xlu0 %377
    %379 = vrot.lane.b32.xlu0 %v368, 127
    %v380 = vpop.permute.xlu0 %379
    %v381 = vsel %vm105, %v378, %v380
    %v382 = vsel %vm105, %v380, %v378
    %v383 = vsel %vm180, 0.0, %v381
    %v384 = vsel %vm181, 0.0, %v382
    %s385 = scalar_lea.vmem %s3, 16
    %v386 = vld [vmem:[%s385] sm:$0xff]
    %s387 = scalar_lea.vmem %s4, 16
    %v388 = vld [vmem:[%s387] sm:$0xff]
    %390 = vset.pattern.permute.xlu0 0
    %391 = vperm.xlu0 %390, %v388
    %v392 = vpop.permute.xlu0 %391
    %v395 = vsel %vm191, %v386, 0
    %397 = vmatprep.subr.mxu0 %v376
    %398 = vmatpush1.msra.mxu0 %v375
    %399 = vmatprep.subr.mxu0 %v368
    %400 = vmatpush1.msra.mxu0 %v367
    %401 = vmatprep.subr.mxu0 %v384
    %402 = vmatpush1.msra.mxu0 %v383
    %403 = vmatprep.subr.mxu0 0.0
    %404 = vmatpush1.msra.mxu0 0.0
    %405 = vmatprep.subr.mxu0 0.0
    %406 = vmatpush1.msra.mxu0 0.0
    %407 = vmatprep.subr.mxu0 0.0
    %408 = vmatpush1.msra.mxu0 0.0
    %409 = vmatprep.subr.mxu0 0.0
    %410 = vmatpush1.msra.mxu0 0.0
    %411 = vmatprep.subr.mxu0 0.0
    %412 = vmatpush1.msra.mxu0 0.0
    %413 = vmatprep.subr.mxu0 0.0
    %414 = vmatpush1.msra.mxu0 0.0
    %415 = vmatprep.subr.mxu0 0.0
    %416 = vmatpush1.msra.mxu0 0.0
    %417 = vmatprep.subr.mxu0 0.0
    %418 = vmatpush1.msra.mxu0 0.0
    %419 = vmatprep.subr.mxu0 0.0
    %420 = vmatpush1.msra.mxu0 0.0
    %421 = vmatprep.subr.mxu0 0.0
    %422 = vmatpush1.msra.mxu0 0.0
    %423 = vmatprep.subr.mxu0 0.0
    %424 = vmatpush1.msra.mxu0 0.0
    %425 = vmatprep.subr.mxu0 0.0
    %426 = vmatpush1.msra.mxu0 0.0
    %427 = vmatprep.subr.mxu0 0.0
    %428 = vmatpush1.msra.mxu0 0.0
    %429 = vmatprep.subr.mxu0 0.0
    %430 = vmatpush1.msra.mxu0 0.0
    %431 = vmatprep.subr.mxu0 0.0
    %432 = vmatpush1.msra.mxu0 0.0
    %433 = vmatprep.subr.mxu0 0.0
    %434 = vmatpush1.msra.mxu0 0.0
    %435 = vmatprep.subr.mxu0 0.0
    %436 = vmatpush1.msra.mxu0 0.0
    %437 = vmatprep.subr.mxu0 0.0
    %438 = vmatpush1.msra.mxu0 0.0
    %439 = vmatprep.subr.mxu0 0.0
    %440 = vmatpush1.msra.mxu0 0.0
    %441 = vmatprep.subr.mxu0 0.0
    %442 = vmatpush1.msra.mxu0 0.0
    %443 = vmatprep.subr.mxu0 0.0
    %444 = vmatpush1.msra.mxu0 0.0
    %445 = vmatprep.subr.mxu0 0.0
    %446 = vmatpush1.msra.mxu0 0.0
    %447 = vmatprep.subr.mxu0 0.0
    %448 = vmatpush1.msra.mxu0 0.0
    %449 = vmatprep.subr.mxu0 0.0
    %450 = vmatpush1.msra.mxu0 0.0
    %451 = vmatprep.subr.mxu0 0.0
    %452 = vmatpush1.msra.mxu0 0.0
    %453 = vmatprep.subr.mxu0 0.0
    %454 = vmatpush1.msra.mxu0 0.0
    %455 = vmatprep.subr.mxu0 0.0
    %456 = vmatpush1.msra.mxu0 0.0
    %457 = vmatprep.subr.mxu0 0.0
    %458 = vmatpush1.msra.mxu0 0.0
    %459 = vmatprep.subr.mxu0 0.0
    %460 = vmatpush1.msra.mxu0 0.0
    %461 = vmatprep.mubr.f32.mxu0 0.0
    %462 = vmatmul.mubr.f32.gmra.mrb[0].mxu0 %v395
    %v463 = vpop.f32.mrb[0].mxu0
    %v464 = vadd.f32 %v392, %v463
    %v465 = vpop.f32.mrb[0].mxu0
    %v466 = vadd.f32 %v392, %v465
    %467 = vdwg.mxu0
    %v468 = vmax.f32 %v464, 0.0
    %v469 = vmax.f32 %v466, 0.0
    %v470 = vcombine.high %v468, 0.0
    %v472 = vunpack.c.l.s4 1983009808
    %v473 = vunpack.c.0.s8 %v472
    %v474 = vlaneseq
    %v475 = vshrl.u32 %v474, 7
    %v476 = vsub.s32 %v473, %v475
    %v477 = vrot.slane %v468, %v476
    %v479 = vunpack.c.l.s4 1983009808
    %v480 = vunpack.c.0.s8 %v479
    %v481 = vlaneseq
    %v482 = vshrl.u32 %v481, 7
    %v483 = vsub.s32 %v480, %v482
    %v484 = vrot.slane %v470, %v483
    %v485 = vcombine.high %v469, 0.0
    %v487 = vunpack.c.l.s4 1983009808
    %v488 = vunpack.c.0.s8 %v487
    %v489 = vlaneseq
    %v490 = vshrl.u32 %v489, 7
    %v491 = vsub.s32 %v488, %v490
    %v492 = vrot.slane %v469, %v491
    %v494 = vunpack.c.l.s4 1983009808
    %v495 = vunpack.c.0.s8 %v494
    %v496 = vlaneseq
    %v497 = vshrl.u32 %v496, 7
    %v498 = vsub.s32 %v495, %v497
    %v499 = vrot.slane %v485, %v498
    %v500 = vcombine.low %v477, %v492
    %v501 = vcombine.high %v477, %v492
    %v503 = vunpack.c.l.s4 1934713408
    %v504 = vunpack.c.0.s8 %v503
    %v505 = vlaneseq
    %v506 = vshrl.u32 %v505, 7
    %v507 = vsub.s32 %v504, %v506
    %v508 = vrot.slane %v500, %v507
    %v510 = vunpack.c.l.s4 1934713408
    %v511 = vunpack.c.0.s8 %v510
    %v512 = vlaneseq
    %v513 = vshrl.u32 %v512, 7
    %v514 = vsub.s32 %v511, %v513
    %v515 = vrot.slane %v501, %v514
    %v516 = vcombine.low %v484, %v499
    %v517 = vcombine.high %v484, %v499
    %v519 = vunpack.c.l.s4 1934713408
    %v520 = vunpack.c.0.s8 %v519
    %v521 = vlaneseq
    %v522 = vshrl.u32 %v521, 7
    %v523 = vsub.s32 %v520, %v522
    %v524 = vrot.slane %v516, %v523
    %v526 = vunpack.c.l.s4 1934713408
    %v527 = vunpack.c.0.s8 %v526
    %v528 = vlaneseq
    %v529 = vshrl.u32 %v528, 7
    %v530 = vsub.s32 %v527, %v529
    %v531 = vrot.slane %v517, %v530
    %v532 = vcombine.high %v508, 0.0
    %v533 = vcombine.high %v515, 0.0
    %v534 = vcombine.high %v524, 0.0
    %v535 = vcombine.high %v531, 0.0
    %v536 = vld [vmem:[#allocation3] sm:$0xff]
    %v537 = vld [vmem:[#allocation3 + $0x8] sm:$0xff]
    %v538 = vld [vmem:[#allocation3 + $0x10] sm:$0xff]
    %v539 = vld [vmem:[#allocation3 + $0x18] sm:$0xff]
    %v540 = vld [vmem:[#allocation3 + $0x20] sm:$0xff]
    %v541 = vld [vmem:[#allocation3 + $0x28] sm:$0xff]
    %v542 = vld [vmem:[#allocation3 + $0x30] sm:$0xff]
    %v543 = vld [vmem:[#allocation3 + $0x38] sm:$0xff]
    %v544 = vld [vmem:[#allocation3 + $0x40] sm:$0xff]
    %v545 = vld [vmem:[#allocation3 + $0x48] sm:$0xff]
    %v546 = vld [vmem:[#allocation3 + $0x50] sm:$0xff]
    %v547 = vld [vmem:[#allocation3 + $0x58] sm:$0xff]
    %v548 = vld [vmem:[#allocation3 + $0x60] sm:$0xff]
    %v549 = vld [vmem:[#allocation3 + $0x68] sm:$0xff]
    %v550 = vld [vmem:[#allocation3 + $0x70] sm:$0xff]
    %v551 = vld [vmem:[#allocation3 + $0x78] sm:$0xff]
    %552 = vmatprep.subr.mxu0 0.0
    %553 = vmatpush1.xpose.msra.mxu0 %v508
    %554 = vmatprep.subr.mxu0 0.0
    %555 = vmatpush1.xpose.msra.mxu0 0.0
    %556 = vmatprep.subr.mxu0 0.0
    %557 = vmatpush1.xpose.msra.mxu0 0.0
    %558 = vmatprep.subr.mxu0 0.0
    %559 = vmatpush1.xpose.msra.mxu0 0.0
    %560 = vmatprep.subr.mxu0 0.0
    %561 = vmatpush1.xpose.msra.mxu0 0.0
    %562 = vmatprep.subr.mxu0 0.0
    %563 = vmatpush1.xpose.msra.mxu0 0.0
    %564 = vmatprep.subr.mxu0 0.0
    %565 = vmatpush1.xpose.msra.mxu0 0.0
    %566 = vmatprep.subr.mxu0 0.0
    %567 = vmatpush1.xpose.msra.mxu0 0.0
    %568 = vmatprep.subr.mxu0 0.0
    %569 = vmatpush1.xpose.msra.mxu0 0.0
    %570 = vmatprep.subr.mxu0 0.0
    %571 = vmatpush1.xpose.msra.mxu0 0.0
    %572 = vmatprep.subr.mxu0 0.0
    %573 = vmatpush1.xpose.msra.mxu0 0.0
    %574 = vmatprep.subr.mxu0 0.0
    %575 = vmatpush1.xpose.msra.mxu0 0.0
    %576 = vmatprep.subr.mxu0 0.0
    %577 = vmatpush1.xpose.msra.mxu0 0.0
    %578 = vmatprep.subr.mxu0 0.0
    %579 = vmatpush1.xpose.msra.mxu0 0.0
    %580 = vmatprep.subr.mxu0 0.0
    %581 = vmatpush1.xpose.msra.mxu0 0.0
    %582 = vmatprep.subr.mxu0 0.0
    %583 = vmatpush1.xpose.msra.mxu0 0.0
    %584 = vmatprep.subr.mxu0 0.0
    %585 = vmatpush1.xpose.msra.mxu0 0.0
    %586 = vmatprep.subr.mxu0 0.0
    %587 = vmatpush1.xpose.msra.mxu0 0.0
    %588 = vmatprep.subr.mxu0 0.0
    %589 = vmatpush1.xpose.msra.mxu0 0.0
    %590 = vmatprep.subr.mxu0 0.0
    %591 = vmatpush1.xpose.msra.mxu0 0.0
    %592 = vmatprep.subr.mxu0 0.0
    %593 = vmatpush1.xpose.msra.mxu0 0.0
    %594 = vmatprep.subr.mxu0 0.0
    %595 = vmatpush1.xpose.msra.mxu0 0.0
    %596 = vmatprep.subr.mxu0 0.0
    %597 = vmatpush1.xpose.msra.mxu0 0.0
    %598 = vmatprep.subr.mxu0 0.0
    %599 = vmatpush1.xpose.msra.mxu0 0.0
    %600 = vmatprep.subr.mxu0 0.0
    %601 = vmatpush1.xpose.msra.mxu0 0.0
    %602 = vmatprep.subr.mxu0 0.0
    %603 = vmatpush1.xpose.msra.mxu0 0.0
    %604 = vmatprep.subr.mxu0 0.0
    %605 = vmatpush1.xpose.msra.mxu0 0.0
    %606 = vmatprep.subr.mxu0 0.0
    %607 = vmatpush1.xpose.msra.mxu0 0.0
    %608 = vmatprep.subr.mxu0 0.0
    %609 = vmatpush1.xpose.msra.mxu0 0.0
    %610 = vmatprep.subr.mxu0 0.0
    %611 = vmatpush1.xpose.msra.mxu0 0.0
    %612 = vmatprep.subr.mxu0 0.0
    %613 = vmatpush1.xpose.msra.mxu0 0.0
    %614 = vmatprep.subr.mxu0 0.0
    %615 = vmatpush1.xpose.msra.mxu0 0.0
    %616 = vmatprep.mubr.f32.mxu0 0.0
    %617 = vmatmul.mubr.f32.gmra.mrb[0].mxu0 %v536
    %v618 = vpop.f32.mrb[0].mxu0
    %v619 = vadd.f32 0.0, %v618
    %v620 = vpop.f32.mrb[0].mxu0
    %621 = vmatprep.mubr.f32.mxu0 0.0
    %622 = vmatmul.mubr.f32.gmra.mrb[0].mxu0 %v537
    %v623 = vpop.f32.mrb[0].mxu0
    %v624 = vadd.f32 0.0, %v623
    %v625 = vpop.f32.mrb[0].mxu0
    %626 = vdwg.mxu0
    %627 = vmatprep.subr.mxu0 0.0
    %628 = vmatpush1.xpose.msra.mxu0 %v532
    %629 = vmatprep.subr.mxu0 0.0
    %630 = vmatpush1.xpose.msra.mxu0 0.0
    %631 = vmatprep.subr.mxu0 0.0
    %632 = vmatpush1.xpose.msra.mxu0 0.0
    %633 = vmatprep.subr.mxu0 0.0
    %634 = vmatpush1.xpose.msra.mxu0 0.0
    %635 = vmatprep.subr.mxu0 0.0
    %636 = vmatpush1.xpose.msra.mxu0 0.0
    %637 = vmatprep.subr.mxu0 0.0
    %638 = vmatpush1.xpose.msra.mxu0 0.0
    %639 = vmatprep.subr.mxu0 0.0
    %640 = vmatpush1.xpose.msra.mxu0 0.0
    %641 = vmatprep.subr.mxu0 0.0
    %642 = vmatpush1.xpose.msra.mxu0 0.0
    %643 = vmatprep.subr.mxu0 0.0
    %644 = vmatpush1.xpose.msra.mxu0 0.0
    %645 = vmatprep.subr.mxu0 0.0
    %646 = vmatpush1.xpose.msra.mxu0 0.0
    %647 = vmatprep.subr.mxu0 0.0
    %648 = vmatpush1.xpose.msra.mxu0 0.0
    %649 = vmatprep.subr.mxu0 0.0
    %650 = vmatpush1.xpose.msra.mxu0 0.0
    %651 = vmatprep.subr.mxu0 0.0
    %652 = vmatpush1.xpose.msra.mxu0 0.0
    %653 = vmatprep.subr.mxu0 0.0
    %654 = vmatpush1.xpose.msra.mxu0 0.0
    %655 = vmatprep.subr.mxu0 0.0
    %656 = vmatpush1.xpose.msra.mxu0 0.0
    %657 = vmatprep.subr.mxu0 0.0
    %658 = vmatpush1.xpose.msra.mxu0 0.0
    %659 = vmatprep.subr.mxu0 0.0
    %660 = vmatpush1.xpose.msra.mxu0 0.0
    %661 = vmatprep.subr.mxu0 0.0
    %662 = vmatpush1.xpose.msra.mxu0 0.0
    %663 = vmatprep.subr.mxu0 0.0
    %664 = vmatpush1.xpose.msra.mxu0 0.0
    %665 = vmatprep.subr.mxu0 0.0
    %666 = vmatpush1.xpose.msra.mxu0 0.0
    %667 = vmatprep.subr.mxu0 0.0
    %668 = vmatpush1.xpose.msra.mxu0 0.0
    %669 = vmatprep.subr.mxu0 0.0
    %670 = vmatpush1.xpose.msra.mxu0 0.0
    %671 = vmatprep.subr.mxu0 0.0
    %672 = vmatpush1.xpose.msra.mxu0 0.0
    %673 = vmatprep.subr.mxu0 0.0
    %674 = vmatpush1.xpose.msra.mxu0 0.0
    %675 = vmatprep.subr.mxu0 0.0
    %676 = vmatpush1.xpose.msra.mxu0 0.0
    %677 = vmatprep.subr.mxu0 0.0
    %678 = vmatpush1.xpose.msra.mxu0 0.0
    %679 = vmatprep.subr.mxu0 0.0
    %680 = vmatpush1.xpose.msra.mxu0 0.0
    %681 = vmatprep.subr.mxu0 0.0
    %682 = vmatpush1.xpose.msra.mxu0 0.0
    %683 = vmatprep.subr.mxu0 0.0
    %684 = vmatpush1.xpose.msra.mxu0 0.0
    %685 = vmatprep.subr.mxu0 0.0
    %686 = vmatpush1.xpose.msra.mxu0 0.0
    %687 = vmatprep.subr.mxu0 0.0
    %688 = vmatpush1.xpose.msra.mxu0 0.0
    %689 = vmatprep.subr.mxu0 0.0
    %690 = vmatpush1.xpose.msra.mxu0 0.0
    %691 = vmatprep.mubr.f32.mxu0 0.0
    %692 = vmatmul.mubr.f32.gmra.mrb[0].mxu0 %v538
    %v693 = vpop.f32.mrb[0].mxu0
    %v694 = vadd.f32 0.0, %v693
    %v695 = vpop.f32.mrb[0].mxu0
    %696 = vmatprep.mubr.f32.mxu0 0.0
    %697 = vmatmul.mubr.f32.gmra.mrb[0].mxu0 %v539
    %v698 = vpop.f32.mrb[0].mxu0
    %v699 = vadd.f32 0.0, %v698
    %v700 = vpop.f32.mrb[0].mxu0
    %701 = vdwg.mxu0
    %702 = vmatprep.subr.mxu0 0.0
    %703 = vmatpush1.xpose.msra.mxu0 %v515
    %704 = vmatprep.subr.mxu0 0.0
    %705 = vmatpush1.xpose.msra.mxu0 0.0
    %706 = vmatprep.subr.mxu0 0.0
    %707 = vmatpush1.xpose.msra.mxu0 0.0
    %708 = vmatprep.subr.mxu0 0.0
    %709 = vmatpush1.xpose.msra.mxu0 0.0
    %710 = vmatprep.subr.mxu0 0.0
    %711 = vmatpush1.xpose.msra.mxu0 0.0
    %712 = vmatprep.subr.mxu0 0.0
    %713 = vmatpush1.xpose.msra.mxu0 0.0
    %714 = vmatprep.subr.mxu0 0.0
    %715 = vmatpush1.xpose.msra.mxu0 0.0
    %716 = vmatprep.subr.mxu0 0.0
    %717 = vmatpush1.xpose.msra.mxu0 0.0
    %718 = vmatprep.subr.mxu0 0.0
    %719 = vmatpush1.xpose.msra.mxu0 0.0
    %720 = vmatprep.subr.mxu0 0.0
    %721 = vmatpush1.xpose.msra.mxu0 0.0
    %722 = vmatprep.subr.mxu0 0.0
    %723 = vmatpush1.xpose.msra.mxu0 0.0
    %724 = vmatprep.subr.mxu0 0.0
    %725 = vmatpush1.xpose.msra.mxu0 0.0
    %726 = vmatprep.subr.mxu0 0.0
    %727 = vmatpush1.xpose.msra.mxu0 0.0
    %728 = vmatprep.subr.mxu0 0.0
    %729 = vmatpush1.xpose.msra.mxu0 0.0
    %730 = vmatprep.subr.mxu0 0.0
    %731 = vmatpush1.xpose.msra.mxu0 0.0
    %732 = vmatprep.subr.mxu0 0.0
    %733 = vmatpush1.xpose.msra.mxu0 0.0
    %734 = vmatprep.subr.mxu0 0.0
    %735 = vmatpush1.xpose.msra.mxu0 0.0
    %736 = vmatprep.subr.mxu0 0.0
    %737 = vmatpush1.xpose.msra.mxu0 0.0
    %738 = vmatprep.subr.mxu0 0.0
    %739 = vmatpush1.xpose.msra.mxu0 0.0
    %740 = vmatprep.subr.mxu0 0.0
    %741 = vmatpush1.xpose.msra.mxu0 0.0
    %742 = vmatprep.subr.mxu0 0.0
    %743 = vmatpush1.xpose.msra.mxu0 0.0
    %744 = vmatprep.subr.mxu0 0.0
    %745 = vmatpush1.xpose.msra.mxu0 0.0
    %746 = vmatprep.subr.mxu0 0.0
    %747 = vmatpush1.xpose.msra.mxu0 0.0
    %748 = vmatprep.subr.mxu0 0.0
    %749 = vmatpush1.xpose.msra.mxu0 0.0
    %750 = vmatprep.subr.mxu0 0.0
    %751 = vmatpush1.xpose.msra.mxu0 0.0
    %752 = vmatprep.subr.mxu0 0.0
    %753 = vmatpush1.xpose.msra.mxu0 0.0
    %754 = vmatprep.subr.mxu0 0.0
    %755 = vmatpush1.xpose.msra.mxu0 0.0
    %756 = vmatprep.subr.mxu0 0.0
    %757 = vmatpush1.xpose.msra.mxu0 0.0
    %758 = vmatprep.subr.mxu0 0.0
    %759 = vmatpush1.xpose.msra.mxu0 0.0
    %760 = vmatprep.subr.mxu0 0.0
    %761 = vmatpush1.xpose.msra.mxu0 0.0
    %762 = vmatprep.subr.mxu0 0.0
    %763 = vmatpush1.xpose.msra.mxu0 0.0
    %764 = vmatprep.subr.mxu0 0.0
    %765 = vmatpush1.xpose.msra.mxu0 0.0
    %766 = vmatprep.mubr.f32.mxu0 0.0
    %767 = vmatmul.mubr.f32.gmra.mrb[0].mxu0 %v540
    %v768 = vpop.f32.mrb[0].mxu0
    %v769 = vadd.f32 0.0, %v768
    %v770 = vpop.f32.mrb[0].mxu0
    %771 = vmatprep.mubr.f32.mxu0 0.0
    %772 = vmatmul.mubr.f32.gmra.mrb[0].mxu0 %v541
    %v773 = vpop.f32.mrb[0].mxu0
    %v774 = vadd.f32 0.0, %v773
    %v775 = vpop.f32.mrb[0].mxu0
    %776 = vdwg.mxu0
    %777 = vmatprep.subr.mxu0 0.0
    %778 = vmatpush1.xpose.msra.mxu0 %v533
    %779 = vmatprep.subr.mxu0 0.0
    %780 = vmatpush1.xpose.msra.mxu0 0.0
    %781 = vmatprep.subr.mxu0 0.0
    %782 = vmatpush1.xpose.msra.mxu0 0.0
    %783 = vmatprep.subr.mxu0 0.0
    %784 = vmatpush1.xpose.msra.mxu0 0.0
    %785 = vmatprep.subr.mxu0 0.0
    %786 = vmatpush1.xpose.msra.mxu0 0.0
    %787 = vmatprep.subr.mxu0 0.0
    %788 = vmatpush1.xpose.msra.mxu0 0.0
    %789 = vmatprep.subr.mxu0 0.0
    %790 = vmatpush1.xpose.msra.mxu0 0.0
    %791 = vmatprep.subr.mxu0 0.0
    %792 = vmatpush1.xpose.msra.mxu0 0.0
    %793 = vmatprep.subr.mxu0 0.0
    %794 = vmatpush1.xpose.msra.mxu0 0.0
    %795 = vmatprep.subr.mxu0 0.0
    %796 = vmatpush1.xpose.msra.mxu0 0.0
    %797 = vmatprep.subr.mxu0 0.0
    %798 = vmatpush1.xpose.msra.mxu0 0.0
    %799 = vmatprep.subr.mxu0 0.0
    %800 = vmatpush1.xpose.msra.mxu0 0.0
    %801 = vmatprep.subr.mxu0 0.0
    %802 = vmatpush1.xpose.msra.mxu0 0.0
    %803 = vmatprep.subr.mxu0 0.0
    %804 = vmatpush1.xpose.msra.mxu0 0.0
    %805 = vmatprep.subr.mxu0 0.0
    %806 = vmatpush1.xpose.msra.mxu0 0.0
    %807 = vmatprep.subr.mxu0 0.0
    %808 = vmatpush1.xpose.msra.mxu0 0.0
    %809 = vmatprep.subr.mxu0 0.0
    %810 = vmatpush1.xpose.msra.mxu0 0.0
    %811 = vmatprep.subr.mxu0 0.0
    %812 = vmatpush1.xpose.msra.mxu0 0.0
    %813 = vmatprep.subr.mxu0 0.0
    %814 = vmatpush1.xpose.msra.mxu0 0.0
    %815 = vmatprep.subr.mxu0 0.0
    %816 = vmatpush1.xpose.msra.mxu0 0.0
    %817 = vmatprep.subr.mxu0 0.0
    %818 = vmatpush1.xpose.msra.mxu0 0.0
    %819 = vmatprep.subr.mxu0 0.0
    %820 = vmatpush1.xpose.msra.mxu0 0.0
    %821 = vmatprep.subr.mxu0 0.0
    %822 = vmatpush1.xpose.msra.mxu0 0.0
    %823 = vmatprep.subr.mxu0 0.0
    %824 = vmatpush1.xpose.msra.mxu0 0.0
    %825 = vmatprep.subr.mxu0 0.0
    %826 = vmatpush1.xpose.msra.mxu0 0.0
    %827 = vmatprep.subr.mxu0 0.0
    %828 = vmatpush1.xpose.msra.mxu0 0.0
    %829 = vmatprep.subr.mxu0 0.0
    %830 = vmatpush1.xpose.msra.mxu0 0.0
    %831 = vmatprep.subr.mxu0 0.0
    %832 = vmatpush1.xpose.msra.mxu0 0.0
    %833 = vmatprep.subr.mxu0 0.0
    %834 = vmatpush1.xpose.msra.mxu0 0.0
    %835 = vmatprep.subr.mxu0 0.0
    %836 = vmatpush1.xpose.msra.mxu0 0.0
    %837 = vmatprep.subr.mxu0 0.0
    %838 = vmatpush1.xpose.msra.mxu0 0.0
    %839 = vmatprep.subr.mxu0 0.0
    %840 = vmatpush1.xpose.msra.mxu0 0.0
    %841 = vmatprep.mubr.f32.mxu0 0.0
    %842 = vmatmul.mubr.f32.gmra.mrb[0].mxu0 %v542
    %v843 = vpop.f32.mrb[0].mxu0
    %v844 = vadd.f32 0.0, %v843
    %v845 = vpop.f32.mrb[0].mxu0
    %846 = vmatprep.mubr.f32.mxu0 0.0
    %847 = vmatmul.mubr.f32.gmra.mrb[0].mxu0 %v543
    %v848 = vpop.f32.mrb[0].mxu0
    %v849 = vadd.f32 0.0, %v848
    %v850 = vpop.f32.mrb[0].mxu0
    %851 = vdwg.mxu0
    %852 = vmatprep.subr.mxu0 0.0
    %853 = vmatpush1.xpose.msra.mxu0 %v524
    %854 = vmatprep.subr.mxu0 0.0
    %855 = vmatpush1.xpose.msra.mxu0 0.0
    %856 = vmatprep.subr.mxu0 0.0
    %857 = vmatpush1.xpose.msra.mxu0 0.0
    %858 = vmatprep.subr.mxu0 0.0
    %859 = vmatpush1.xpose.msra.mxu0 0.0
    %860 = vmatprep.subr.mxu0 0.0
    %861 = vmatpush1.xpose.msra.mxu0 0.0
    %862 = vmatprep.subr.mxu0 0.0
    %863 = vmatpush1.xpose.msra.mxu0 0.0
    %864 = vmatprep.subr.mxu0 0.0
    %865 = vmatpush1.xpose.msra.mxu0 0.0
    %866 = vmatprep.subr.mxu0 0.0
    %867 = vmatpush1.xpose.msra.mxu0 0.0
    %868 = vmatprep.subr.mxu0 0.0
    %869 = vmatpush1.xpose.msra.mxu0 0.0
    %870 = vmatprep.subr.mxu0 0.0
    %871 = vmatpush1.xpose.msra.mxu0 0.0
    %872 = vmatprep.subr.mxu0 0.0
    %873 = vmatpush1.xpose.msra.mxu0 0.0
    %874 = vmatprep.subr.mxu0 0.0
    %875 = vmatpush1.xpose.msra.mxu0 0.0
    %876 = vmatprep.subr.mxu0 0.0
    %877 = vmatpush1.xpose.msra.mxu0 0.0
    %878 = vmatprep.subr.mxu0 0.0
    %879 = vmatpush1.xpose.msra.mxu0 0.0
    %880 = vmatprep.subr.mxu0 0.0
    %881 = vmatpush1.xpose.msra.mxu0 0.0
    %882 = vmatprep.subr.mxu0 0.0
    %883 = vmatpush1.xpose.msra.mxu0 0.0
    %884 = vmatprep.subr.mxu0 0.0
    %885 = vmatpush1.xpose.msra.mxu0 0.0
    %886 = vmatprep.subr.mxu0 0.0
    %887 = vmatpush1.xpose.msra.mxu0 0.0
    %888 = vmatprep.subr.mxu0 0.0
    %889 = vmatpush1.xpose.msra.mxu0 0.0
    %890 = vmatprep.subr.mxu0 0.0
    %891 = vmatpush1.xpose.msra.mxu0 0.0
    %892 = vmatprep.subr.mxu0 0.0
    %893 = vmatpush1.xpose.msra.mxu0 0.0
    %894 = vmatprep.subr.mxu0 0.0
    %895 = vmatpush1.xpose.msra.mxu0 0.0
    %896 = vmatprep.subr.mxu0 0.0
    %897 = vmatpush1.xpose.msra.mxu0 0.0
    %898 = vmatprep.subr.mxu0 0.0
    %899 = vmatpush1.xpose.msra.mxu0 0.0
    %900 = vmatprep.subr.mxu0 0.0
    %901 = vmatpush1.xpose.msra.mxu0 0.0
    %902 = vmatprep.subr.mxu0 0.0
    %903 = vmatpush1.xpose.msra.mxu0 0.0
    %904 = vmatprep.subr.mxu0 0.0
    %905 = vmatpush1.xpose.msra.mxu0 0.0
    %906 = vmatprep.subr.mxu0 0.0
    %907 = vmatpush1.xpose.msra.mxu0 0.0
    %908 = vmatprep.subr.mxu0 0.0
    %909 = vmatpush1.xpose.msra.mxu0 0.0
    %910 = vmatprep.subr.mxu0 0.0
    %911 = vmatpush1.xpose.msra.mxu0 0.0
    %912 = vmatprep.subr.mxu0 0.0
    %913 = vmatpush1.xpose.msra.mxu0 0.0
    %914 = vmatprep.subr.mxu0 0.0
    %915 = vmatpush1.xpose.msra.mxu0 0.0
    %916 = vmatprep.mubr.f32.mxu0 0.0
    %917 = vmatmul.mubr.f32.gmra.mrb[0].mxu0 %v544
    %v918 = vpop.f32.mrb[0].mxu0
    %v919 = vadd.f32 0.0, %v918
    %v920 = vpop.f32.mrb[0].mxu0
    %921 = vmatprep.mubr.f32.mxu0 0.0
    %922 = vmatmul.mubr.f32.gmra.mrb[0].mxu0 %v545
    %v923 = vpop.f32.mrb[0].mxu0
    %v924 = vadd.f32 0.0, %v923
    %v925 = vpop.f32.mrb[0].mxu0
    %926 = vdwg.mxu0
    %927 = vmatprep.subr.mxu0 0.0
    %928 = vmatpush1.xpose.msra.mxu0 %v534
    %929 = vmatprep.subr.mxu0 0.0
    %930 = vmatpush1.xpose.msra.mxu0 0.0
    %931 = vmatprep.subr.mxu0 0.0
    %932 = vmatpush1.xpose.msra.mxu0 0.0
    %933 = vmatprep.subr.mxu0 0.0
    %934 = vmatpush1.xpose.msra.mxu0 0.0
    %935 = vmatprep.subr.mxu0 0.0
    %936 = vmatpush1.xpose.msra.mxu0 0.0
    %937 = vmatprep.subr.mxu0 0.0
    %938 = vmatpush1.xpose.msra.mxu0 0.0
    %939 = vmatprep.subr.mxu0 0.0
    %940 = vmatpush1.xpose.msra.mxu0 0.0
    %941 = vmatprep.subr.mxu0 0.0
    %942 = vmatpush1.xpose.msra.mxu0 0.0
    %943 = vmatprep.subr.mxu0 0.0
    %944 = vmatpush1.xpose.msra.mxu0 0.0
    %945 = vmatprep.subr.mxu0 0.0
    %946 = vmatpush1.xpose.msra.mxu0 0.0
    %947 = vmatprep.subr.mxu0 0.0
    %948 = vmatpush1.xpose.msra.mxu0 0.0
    %949 = vmatprep.subr.mxu0 0.0
    %950 = vmatpush1.xpose.msra.mxu0 0.0
    %951 = vmatprep.subr.mxu0 0.0
    %952 = vmatpush1.xpose.msra.mxu0 0.0
    %953 = vmatprep.subr.mxu0 0.0
    %954 = vmatpush1.xpose.msra.mxu0 0.0
    %955 = vmatprep.subr.mxu0 0.0
    %956 = vmatpush1.xpose.msra.mxu0 0.0
    %957 = vmatprep.subr.mxu0 0.0
    %958 = vmatpush1.xpose.msra.mxu0 0.0
    %959 = vmatprep.subr.mxu0 0.0
    %960 = vmatpush1.xpose.msra.mxu0 0.0
    %961 = vmatprep.subr.mxu0 0.0
    %962 = vmatpush1.xpose.msra.mxu0 0.0
    %963 = vmatprep.subr.mxu0 0.0
    %964 = vmatpush1.xpose.msra.mxu0 0.0
    %965 = vmatprep.subr.mxu0 0.0
    %966 = vmatpush1.xpose.msra.mxu0 0.0
    %967 = vmatprep.subr.mxu0 0.0
    %968 = vmatpush1.xpose.msra.mxu0 0.0
    %969 = vmatprep.subr.mxu0 0.0
    %970 = vmatpush1.xpose.msra.mxu0 0.0
    %971 = vmatprep.subr.mxu0 0.0
    %972 = vmatpush1.xpose.msra.mxu0 0.0
    %973 = vmatprep.subr.mxu0 0.0
    %974 = vmatpush1.xpose.msra.mxu0 0.0
    %975 = vmatprep.subr.mxu0 0.0
    %976 = vmatpush1.xpose.msra.mxu0 0.0
    %977 = vmatprep.subr.mxu0 0.0
    %978 = vmatpush1.xpose.msra.mxu0 0.0
    %979 = vmatprep.subr.mxu0 0.0
    %980 = vmatpush1.xpose.msra.mxu0 0.0
    %981 = vmatprep.subr.mxu0 0.0
    %982 = vmatpush1.xpose.msra.mxu0 0.0
    %983 = vmatprep.subr.mxu0 0.0
    %984 = vmatpush1.xpose.msra.mxu0 0.0
    %985 = vmatprep.subr.mxu0 0.0
    %986 = vmatpush1.xpose.msra.mxu0 0.0
    %987 = vmatprep.subr.mxu0 0.0
    %988 = vmatpush1.xpose.msra.mxu0 0.0
    %989 = vmatprep.subr.mxu0 0.0
    %990 = vmatpush1.xpose.msra.mxu0 0.0
    %991 = vmatprep.mubr.f32.mxu0 0.0
    %992 = vmatmul.mubr.f32.gmra.mrb[0].mxu0 %v546
    %v993 = vpop.f32.mrb[0].mxu0
    %v994 = vadd.f32 0.0, %v993
    %v995 = vpop.f32.mrb[0].mxu0
    %996 = vmatprep.mubr.f32.mxu0 0.0
    %997 = vmatmul.mubr.f32.gmra.mrb[0].mxu0 %v547
    %v998 = vpop.f32.mrb[0].mxu0
    %v999 = vadd.f32 0.0, %v998
    %v1000 = vpop.f32.mrb[0].mxu0
    %1001 = vdwg.mxu0
    %1002 = vmatprep.subr.mxu0 0.0
    %1003 = vmatpush1.xpose.msra.mxu0 %v531
    %1004 = vmatprep.subr.mxu0 0.0
    %1005 = vmatpush1.xpose.msra.mxu0 0.0
    %1006 = vmatprep.subr.mxu0 0.0
    %1007 = vmatpush1.xpose.msra.mxu0 0.0
    %1008 = vmatprep.subr.mxu0 0.0
    %1009 = vmatpush1.xpose.msra.mxu0 0.0
    %1010 = vmatprep.subr.mxu0 0.0
    %1011 = vmatpush1.xpose.msra.mxu0 0.0
    %1012 = vmatprep.subr.mxu0 0.0
    %1013 = vmatpush1.xpose.msra.mxu0 0.0
    %1014 = vmatprep.subr.mxu0 0.0
    %1015 = vmatpush1.xpose.msra.mxu0 0.0
    %1016 = vmatprep.subr.mxu0 0.0
    %1017 = vmatpush1.xpose.msra.mxu0 0.0
    %1018 = vmatprep.subr.mxu0 0.0
    %1019 = vmatpush1.xpose.msra.mxu0 0.0
    %1020 = vmatprep.subr.mxu0 0.0
    %1021 = vmatpush1.xpose.msra.mxu0 0.0
    %1022 = vmatprep.subr.mxu0 0.0
    %1023 = vmatpush1.xpose.msra.mxu0 0.0
    %1024 = vmatprep.subr.mxu0 0.0
    %1025 = vmatpush1.xpose.msra.mxu0 0.0
    %1026 = vmatprep.subr.mxu0 0.0
    %1027 = vmatpush1.xpose.msra.mxu0 0.0
    %1028 = vmatprep.subr.mxu0 0.0
    %1029 = vmatpush1.xpose.msra.mxu0 0.0
    %1030 = vmatprep.subr.mxu0 0.0
    %1031 = vmatpush1.xpose.msra.mxu0 0.0
    %1032 = vmatprep.subr.mxu0 0.0
    %1033 = vmatpush1.xpose.msra.mxu0 0.0
    %1034 = vmatprep.subr.mxu0 0.0
    %1035 = vmatpush1.xpose.msra.mxu0 0.0
    %1036 = vmatprep.subr.mxu0 0.0
    %1037 = vmatpush1.xpose.msra.mxu0 0.0
    %1038 = vmatprep.subr.mxu0 0.0
    %1039 = vmatpush1.xpose.msra.mxu0 0.0
    %1040 = vmatprep.subr.mxu0 0.0
    %1041 = vmatpush1.xpose.msra.mxu0 0.0
    %1042 = vmatprep.subr.mxu0 0.0
    %1043 = vmatpush1.xpose.msra.mxu0 0.0
    %1044 = vmatprep.subr.mxu0 0.0
    %1045 = vmatpush1.xpose.msra.mxu0 0.0
    %1046 = vmatprep.subr.mxu0 0.0
    %1047 = vmatpush1.xpose.msra.mxu0 0.0
    %1048 = vmatprep.subr.mxu0 0.0
    %1049 = vmatpush1.xpose.msra.mxu0 0.0
    %1050 = vmatprep.subr.mxu0 0.0
    %1051 = vmatpush1.xpose.msra.mxu0 0.0
    %1052 = vmatprep.subr.mxu0 0.0
    %1053 = vmatpush1.xpose.msra.mxu0 0.0
    %1054 = vmatprep.subr.mxu0 0.0
    %1055 = vmatpush1.xpose.msra.mxu0 0.0
    %1056 = vmatprep.subr.mxu0 0.0
    %1057 = vmatpush1.xpose.msra.mxu0 0.0
    %1058 = vmatprep.subr.mxu0 0.0
    %1059 = vmatpush1.xpose.msra.mxu0 0.0
    %1060 = vmatprep.subr.mxu0 0.0
    %1061 = vmatpush1.xpose.msra.mxu0 0.0
    %1062 = vmatprep.subr.mxu0 0.0
    %1063 = vmatpush1.xpose.msra.mxu0 0.0
    %1064 = vmatprep.subr.mxu0 0.0
    %1065 = vmatpush1.xpose.msra.mxu0 0.0
    %1066 = vmatprep.mubr.f32.mxu0 0.0
    %1067 = vmatmul.mubr.f32.gmra.mrb[0].mxu0 %v548
    %v1068 = vpop.f32.mrb[0].mxu0
    %v1069 = vadd.f32 0.0, %v1068
    %v1070 = vpop.f32.mrb[0].mxu0
    %1071 = vmatprep.mubr.f32.mxu0 0.0
    %1072 = vmatmul.mubr.f32.gmra.mrb[0].mxu0 %v549
    %v1073 = vpop.f32.mrb[0].mxu0
    %v1074 = vadd.f32 0.0, %v1073
    %v1075 = vpop.f32.mrb[0].mxu0
    %1076 = vdwg.mxu0
    %1077 = vmatprep.subr.mxu0 0.0
    %1078 = vmatpush1.xpose.msra.mxu0 %v535
    %1079 = vmatprep.subr.mxu0 0.0
    %1080 = vmatpush1.xpose.msra.mxu0 0.0
    %1081 = vmatprep.subr.mxu0 0.0
    %1082 = vmatpush1.xpose.msra.mxu0 0.0
    %1083 = vmatprep.subr.mxu0 0.0
    %1084 = vmatpush1.xpose.msra.mxu0 0.0
    %1085 = vmatprep.subr.mxu0 0.0
    %1086 = vmatpush1.xpose.msra.mxu0 0.0
    %1087 = vmatprep.subr.mxu0 0.0
    %1088 = vmatpush1.xpose.msra.mxu0 0.0
    %1089 = vmatprep.subr.mxu0 0.0
    %1090 = vmatpush1.xpose.msra.mxu0 0.0
    %1091 = vmatprep.subr.mxu0 0.0
    %1092 = vmatpush1.xpose.msra.mxu0 0.0
    %1093 = vmatprep.subr.mxu0 0.0
    %1094 = vmatpush1.xpose.msra.mxu0 0.0
    %1095 = vmatprep.subr.mxu0 0.0
    %1096 = vmatpush1.xpose.msra.mxu0 0.0
    %1097 = vmatprep.subr.mxu0 0.0
    %1098 = vmatpush1.xpose.msra.mxu0 0.0
    %1099 = vmatprep.subr.mxu0 0.0
    %1100 = vmatpush1.xpose.msra.mxu0 0.0
    %1101 = vmatprep.subr.mxu0 0.0
    %1102 = vmatpush1.xpose.msra.mxu0 0.0
    %1103 = vmatprep.subr.mxu0 0.0
    %1104 = vmatpush1.xpose.msra.mxu0 0.0
    %1105 = vmatprep.subr.mxu0 0.0
    %1106 = vmatpush1.xpose.msra.mxu0 0.0
    %1107 = vmatprep.subr.mxu0 0.0
    %1108 = vmatpush1.xpose.msra.mxu0 0.0
    %1109 = vmatprep.subr.mxu0 0.0
    %1110 = vmatpush1.xpose.msra.mxu0 0.0
    %1111 = vmatprep.subr.mxu0 0.0
    %1112 = vmatpush1.xpose.msra.mxu0 0.0
    %1113 = vmatprep.subr.mxu0 0.0
    %1114 = vmatpush1.xpose.msra.mxu0 0.0
    %1115 = vmatprep.subr.mxu0 0.0
    %1116 = vmatpush1.xpose.msra.mxu0 0.0
    %1117 = vmatprep.subr.mxu0 0.0
    %1118 = vmatpush1.xpose.msra.mxu0 0.0
    %1119 = vmatprep.subr.mxu0 0.0
    %1120 = vmatpush1.xpose.msra.mxu0 0.0
    %1121 = vmatprep.subr.mxu0 0.0
    %1122 = vmatpush1.xpose.msra.mxu0 0.0
    %1123 = vmatprep.subr.mxu0 0.0
    %1124 = vmatpush1.xpose.msra.mxu0 0.0
    %1125 = vmatprep.subr.mxu0 0.0
    %1126 = vmatpush1.xpose.msra.mxu0 0.0
    %1127 = vmatprep.subr.mxu0 0.0
    %1128 = vmatpush1.xpose.msra.mxu0 0.0
    %1129 = vmatprep.subr.mxu0 0.0
    %1130 = vmatpush1.xpose.msra.mxu0 0.0
    %1131 = vmatprep.subr.mxu0 0.0
    %1132 = vmatpush1.xpose.msra.mxu0 0.0
    %1133 = vmatprep.subr.mxu0 0.0
    %1134 = vmatpush1.xpose.msra.mxu0 0.0
    %1135 = vmatprep.subr.mxu0 0.0
    %1136 = vmatpush1.xpose.msra.mxu0 0.0
    %1137 = vmatprep.subr.mxu0 0.0
    %1138 = vmatpush1.xpose.msra.mxu0 0.0
    %1139 = vmatprep.subr.mxu0 0.0
    %1140 = vmatpush1.xpose.msra.mxu0 0.0
    %1141 = vmatprep.mubr.f32.mxu0 0.0
    %1142 = vmatmul.mubr.f32.gmra.mrb[0].mxu0 %v550
    %v1143 = vpop.f32.mrb[0].mxu0
    %v1144 = vadd.f32 0.0, %v1143
    %v1145 = vpop.f32.mrb[0].mxu0
    %1146 = vmatprep.mubr.f32.mxu0 0.0
    %1147 = vmatmul.mubr.f32.gmra.mrb[0].mxu0 %v551
    %v1148 = vpop.f32.mrb[0].mxu0
    %v1149 = vadd.f32 0.0, %v1148
    %v1150 = vpop.f32.mrb[0].mxu0
    %1151 = vdwg.mxu0
    %vm1152 = vcmask 15360
    %v1153 = vsel %vm1152, %v619, 0.0
    %v1154 = vsel %vm1152, %v694, 0.0
    %v1155 = vadd.f32 %v1153, %v1154
    %v1156 = vsel %vm1152, %v769, 0.0
    %v1157 = vadd.f32 %v1155, %v1156
    %v1158 = vsel %vm1152, %v844, 0.0
    %v1159 = vadd.f32 %v1157, %v1158
    %v1160 = vsel %vm1152, %v919, 0.0
    %v1161 = vadd.f32 %v1159, %v1160
    %v1162 = vsel %vm1152, %v994, 0.0
    %v1163 = vadd.f32 %v1161, %v1162
    %v1164 = vsel %vm1152, %v1069, 0.0
    %v1165 = vadd.f32 %v1163, %v1164
    %v1166 = vsel %vm1152, %v1144, 0.0
    %v1167 = vadd.f32 %v1165, %v1166
    %v1168 = vsel %vm1152, %v624, 0.0
    %v1169 = vsel %vm1152, %v699, 0.0
    %v1170 = vadd.f32 %v1168, %v1169
    %v1171 = vsel %vm1152, %v774, 0.0
    %v1172 = vadd.f32 %v1170, %v1171
    %v1173 = vsel %vm1152, %v849, 0.0
    %v1174 = vadd.f32 %v1172, %v1173
    %v1175 = vsel %vm1152, %v924, 0.0
    %v1176 = vadd.f32 %v1174, %v1175
    %v1177 = vsel %vm1152, %v999, 0.0
    %v1178 = vadd.f32 %v1176, %v1177
    %v1179 = vsel %vm1152, %v1074, 0.0
    %v1180 = vadd.f32 %v1178, %v1179
    %v1181 = vsel %vm1152, %v1149, 0.0
    %v1182 = vadd.f32 %v1180, %v1181
    %v1183 = vld [vmem:[%s6] sm:$0xff]
    %v1184 = vld [vmem:[%s6 + $0x8] sm:$0xff]
    %1186 = vset.pattern.permute.xlu0 0
    %1187 = vperm.xlu0 %1186, %v1183
    %v1188 = vpop.permute.xlu0 %1187
    %1191 = vset.pattern.permute.xlu0 0
    %1192 = vperm.xlu0 %1191, %v1184
    %v1193 = vpop.permute.xlu0 %1192
    %v1195 = vadd.f32 %v1167, %v1188
    %v1196 = vadd.f32 %v1182, %v1193
    %v1197 = vmax.f32 %v1195, 0.0
    %v1198 = vmax.f32 %v1196, 0.0
    %v1199 = vld [vmem:[%s7] sm:$0xff]
    %v1200 = vld [vmem:[%s7 + $0x8] sm:$0xff]
    %1202 = vset.pattern.permute.xlu0 0
    %1203 = vperm.xlu0 %1202, %v1199
    %v1204 = vpop.permute.xlu0 %1203
    %1207 = vset.pattern.permute.xlu0 0
    %1208 = vperm.xlu0 %1207, %v1200
    %v1209 = vpop.permute.xlu0 %1208
    %v1211 = vmul.f32 %v1204, %v1197
    %v1212 = vmul.f32 %v1209, %v1198
    %v1213 = vsel %vm1152, %v1211, 0.0
    %v1214 = vsel %vm1152, %v1212, 0.0
    %v1215 = vadd.f32 %v1213, %v1214
    %v1216 = vrot.slane %v1215, 4
    %v1217 = vadd.f32 %v1215, %v1216
    %v1218 = vrot.slane %v1217, 2
    %v1219 = vadd.f32 %v1217, %v1218
    %v1220 = vrot.slane %v1219, 1
    %v1221 = vadd.f32 %v1219, %v1220
    %v1222 = vld [vmem:[#allocation2] sm:$0x1]
    %1224 = vset.pattern.permute.xlu0 0
    %1225 = vperm.xlu0 %1224, %v1222
    %v1226 = vpop.permute.xlu0 %1225
    %v1228 = vlaneseq
    %v1229 = vshrl.u32 %v1228, 7
    %v1230 = vsub.s32 0, %v1229
    %v1231 = vrot.slane %v1226, %v1230
    %v1232 = vadd.f32 %v1221, %v1231
    %v1233 = vxor.u32 %v1232, 2147483648
    %v1234 = vmul.f32 %v1233, 1.442695
    %v1235 = vpow.pop %v1234
    %v1236 = vadd.f32 %v1235, 1.0
    %v1237 = vrcp.pop %v1236
    %v1238 = vmul.f32 1.0, %v1237
    %vm1239 = vcmask 8192
    %1240 = vst.msk [vmem:[#allocation6] sm:$0x1] %vm1239, %v1238
    // Predicated region
    $region42: #{ecg_cnn_forward.1} parent=1 // pred_check
      _
    $region43: #{ecg_cnn_forward.1} parent=1 // pred_check_branch
      %1242 = sbr.rel (0) target = $region45
    $region44: #{ecg_cnn_forward.1} parent=1 // pred_region
      %s1244 = ssub.s32 16, 16
      %1245 = vsyncadd [#allocation5], %s1244
      %s1247 = sshll.u32 [#allocation6], 4
      %s1248 = int_to_ptr.vmem [resolvable:$true] %s1247
      %1250 = dma.vmem_to_hbm [thread:$0]  %s1248, 16, %s9, [#allocation5]
    $region45: #{ecg_cnn_forward.1} parent=1 // pred_fallthru
      _
    // Predicated region
    $region46: #{ecg_cnn_forward.1} parent=1 // pred_check
      _
    $region47: #{ecg_cnn_forward.1} parent=1 // pred_check_branch
      %1252 = sbr.rel (0) target = $region49
    $region48: #{ecg_cnn_forward.1} parent=1 // pred_region
      %1253 = dma.done [#allocation5], 16
    $region49: #{ecg_cnn_forward.1} parent=1 // pred_fallthru
      _
    %1254 = vsyncpa [#allocation4], 1
    %1255 = vsyncpa [#allocation5], 1

</llo_original>
